<compile_context>
chip_gen: v6e
topology: v6e:2x2x1
jax: 0.10.0
libtpu: 0.0.40
codegen_flags: <defaults>
</compile_context>

<pallas_src>
import math

import jax
import jax.numpy as jnp
from jax import lax
from jax.experimental import pallas as pl
from jax.experimental.pallas import tpu as pltpu

# ----------------------------- config (small) --------------------------------
VOCAB_SIZE  = 64
EMBED_DIM   = 32          # embedding_dim == out_size so residuals line up
OUT_SIZE    = 32
NUM_HEADS   = 4
HEAD_SIZE   = 8
FF_HIDDEN   = 64
MAX_SEQ_LEN = 8
NUM_GROUPS  = 2           # query_num_groups == number of KV heads
NUM_BLOCKS  = 2
RMS_EPS     = 1.1920929e-07   # torch nn.RMSNorm default eps = finfo(f32).eps

BATCH = 2
SEQ   = 8

Q_WIDTH   = NUM_HEADS  * HEAD_SIZE        # 32
KV_WIDTH  = NUM_GROUPS * HEAD_SIZE        # 16
QKV_WIDTH = Q_WIDTH + 2 * KV_WIDTH        # 64
HALF      = HEAD_SIZE // 2                # 4
HPG       = NUM_HEADS // NUM_GROUPS       # 2 query heads per KV group
W13_WIDTH = 2 * FF_HIDDEN                 # 128
HEAD_PAD  = 128                           # lane-padded LM head width

# lane offsets inside the per-block (D, 224) bf16 projection slab
W13_OFF    = 0
QKV_OFF    = W13_OFF + W13_WIDTH          # 128 (tile-aligned)
WO_OFF     = QKV_OFF + QKV_WIDTH          # 192
PROJ_WIDTH = WO_OFF + OUT_SIZE            # 224

# lane offsets inside the (M, 96) f32 RoPE slab
COSQ_OFF   = 0
SINQ_OFF   = Q_WIDTH                      # 32
COSK_OFF   = 2 * Q_WIDTH                  # 64
SINK_OFF   = 2 * Q_WIDTH + KV_WIDTH       # 80
ROPE_WIDTH = 2 * (Q_WIDTH + KV_WIDTH)     # 96

assert EMBED_DIM == OUT_SIZE, "residuals require d_in == out_size"
assert Q_WIDTH == EMBED_DIM, "packed weight slab shares the 32-row axis"


# ----------------------------- fused Pallas kernel ----------------------------
def _llama_fwd_kernel(emb_ref, mask_ref, rope_ref, proj_ref, w2_ref,
                      blk_norm_ref, final_norm_ref, w_head_ref, b_head_ref,
                      o_ref):
    """Full forward for all (batch-folded) rows: N blocks + final norm + head."""
    M = emb_ref.shape[0]
    x = emb_ref[...]                                   # (M, D) f32 resident activation
    add_mask = mask_ref[...]                           # (M, M) block-diag causal(+user)
    rope = rope_ref[...]                               # (M, 96) f32
    cos_q = rope[:, COSQ_OFF:COSQ_OFF + Q_WIDTH]
    sin_q = rope[:, SINQ_OFF:SINQ_OFF + Q_WIDTH]       # sign-folded sin
    cos_k = rope[:, COSK_OFF:COSK_OFF + KV_WIDTH]
    sin_k = rope[:, SINK_OFF:SINK_OFF + KV_WIDTH]      # sign-folded sin
    # mask shared by the HPG query heads stacked along sublanes
    mask2 = jnp.concatenate([add_mask] * HPG, axis=0)  # (HPG*M, M)

    scale = 1.0 / math.sqrt(HEAD_SIZE)

    def rmsnorm(v, gain):
        ms = jnp.mean(v * v, axis=-1, keepdims=True)
        return v * lax.rsqrt(ms + RMS_EPS) * gain

    def half_swap(v):
        # rotate_half in the halves-grouped lane layout: pure lane permutation
        # (same as pltpu.roll by width/2 since both halves have equal width).
        w = v.shape[-1]
        return jnp.concatenate([v[:, w // 2:], v[:, :w // 2]], axis=-1)

    def q_head(q, h):        # (M, hd) in [first half | second half] element order
        return jnp.concatenate(
            [q[:, h * HALF:(h + 1) * HALF],
             q[:, Q_WIDTH // 2 + h * HALF:Q_WIDTH // 2 + (h + 1) * HALF]], axis=-1)

    def k_group(k, g):
        return jnp.concatenate(
            [k[:, g * HALF:(g + 1) * HALF],
             k[:, KV_WIDTH // 2 + g * HALF:KV_WIDTH // 2 + (g + 1) * HALF]], axis=-1)

    for blk in range(NUM_BLOCKS):                      # static unroll (2 blocks)
        wblk = proj_ref[blk]                           # (D, 224) bf16: [W1|W3 | Wqkv | Wo]
        gains = blk_norm_ref[blk]                      # (1, 64)  f32: [attn_gain | ffn_gain]

        # ------------------ attention sub-block ------------------
        xb = rmsnorm(x, gains[:, :EMBED_DIM]).astype(jnp.bfloat16)
        qkv = jnp.dot(xb, wblk[:, QKV_OFF:QKV_OFF + QKV_WIDTH],
                      preferred_element_type=jnp.float32)            # (M, 64) fused QKV
        q = qkv[:, :Q_WIDTH]
        k = qkv[:, Q_WIDTH:Q_WIDTH + KV_WIDTH]
        v = qkv[:, Q_WIDTH + KV_WIDTH:]
        # RoPE: q*cos + rotate_half(q)*sin  (rotate_half == half-width lane swap
        # in the grouped layout; sign already folded into sin tables).
        q = q * cos_q + half_swap(q) * sin_q
        k = k * cos_k + half_swap(k) * sin_k

        heads_out = [None] * NUM_HEADS
        for g in range(NUM_GROUPS):                    # group-batched attention
            qg = jnp.concatenate([q_head(q, g * HPG + i) for i in range(HPG)],
                                 axis=0)               # (HPG*M, hd)
            kg = k_group(k, g)                         # (M, hd)
            vg = v[:, g * HEAD_SIZE:(g + 1) * HEAD_SIZE]   # (M, hd), unpermuted
            s = jnp.dot(qg, kg.T, preferred_element_type=jnp.float32) * scale + mask2
            s = s - jnp.max(s, axis=-1, keepdims=True)
            p = jnp.exp(s)
            # approx=True uses the EUP reciprocal slot; switch to approx=False
            # if bit-tight comparison against an f32 reference is needed.
            p = p * pl.reciprocal(jnp.sum(p, axis=-1, keepdims=True), approx=True)
            og = jnp.dot(p, vg, preferred_element_type=jnp.float32)  # (HPG*M, hd)
            for i in range(HPG):
                heads_out[g * HPG + i] = og[i * M:(i + 1) * M, :]
        oh = jnp.concatenate(heads_out, axis=-1).astype(jnp.bfloat16)    # (M, H*hd)
        attn = jnp.dot(oh, wblk[:, WO_OFF:WO_OFF + OUT_SIZE],
                       preferred_element_type=jnp.float32)               # (M, OUT)
        x = x + attn

        # ------------------ SwiGLU feed-forward ------------------
        xb = rmsnorm(x, gains[:, EMBED_DIM:]).astype(jnp.bfloat16)
        h13 = jnp.dot(xb, wblk[:, W13_OFF:W13_OFF + W13_WIDTH],
                      preferred_element_type=jnp.float32)                # (M, 128) fused W1|W3
        h1 = h13[:, :FF_HIDDEN]
        h3 = h13[:, FF_HIDDEN:]
        hact = (h1 * (1.0 / (1.0 + jnp.exp(-h1)))) * h3                  # SiLU(h1) * h3
        x = x + jnp.dot(hact.astype(jnp.bfloat16), w2_ref[blk],
                        preferred_element_type=jnp.float32)              # (M, OUT)

    # -------- final RMSNorm + (dropout = identity at inference) + LM head --------
    xb = rmsnorm(x, final_norm_ref[...]).astype(jnp.bfloat16)
    logits = (jnp.dot(xb, w_head_ref[...], preferred_element_type=jnp.float32)
              + b_head_ref[...])                                         # (M, 128)
    o_ref[...] = logits                                                  # lane-dense store


# ----------------------------- wrapper ----------------------------------------
def llama_forward(params, tokens, mask=None):
    B, S = tokens.shape
    # Embedding lookup = table gather; kept in plain JAX (glue).
    emb = jnp.take(params["embedding"], tokens, axis=0)          # (B, S, D) f32
    M = B * S
    emb2 = emb.reshape(M, EMBED_DIM)                             # batch folded into M

    # Block-diagonal causal additive mask over the folded rows, built on host.
    rows = jnp.arange(M, dtype=jnp.int32)
    rp, rb = rows % S, rows // S
    ok = (rp[None, :] <= rp[:, None]) & (rb[:, None] == rb[None, :])
    add_mask = jnp.where(ok, 0.0, -1e30).astype(jnp.float32)     # (M, M)
    if mask is not None:
        m = jnp.asarray(mask, jnp.float32)
        if m.ndim == 2:
            m = jnp.broadcast_to(m[None], (B, S, S))
        else:
            m = m.reshape(B, S, S)
        blockdiag = jnp.zeros((B, S, B, S), jnp.float32)
        blockdiag = blockdiag.at[jnp.arange(B), :, jnp.arange(B), :].add(m)
        add_mask = add_mask + blockdiag.reshape(M, M)

    rope = jnp.tile(params["rope"][:S], (B, 1))                  # (M, 96) per-row tables

    def full(*shape):
        return pl.BlockSpec(shape, lambda i, _s=shape: (0,) * len(_s))

    out = pl.pallas_call(
        _llama_fwd_kernel,
        out_shape=jax.ShapeDtypeStruct((M, HEAD_PAD), jnp.float32),
        grid=(1,),
        in_specs=[
            full(M, EMBED_DIM),                           # embeddings (batch folded)
            full(M, M),                                   # additive mask
            full(M, ROPE_WIDTH),                          # [cos_q|sin_q|cos_k|sin_k]
            full(NUM_BLOCKS, EMBED_DIM, PROJ_WIDTH),      # per-block [W1|W3|Wqkv|Wo] bf16
            full(NUM_BLOCKS, FF_HIDDEN, OUT_SIZE),        # per-block W2 bf16
            full(NUM_BLOCKS, 1, 2 * EMBED_DIM),           # per-block [attn|ffn] norm gains
            full(1, OUT_SIZE),                            # final RMSNorm gain
            full(OUT_SIZE, HEAD_PAD),                     # LM head weight (lane-padded)
            full(1, HEAD_PAD),                            # LM head bias (lane-padded)
        ],
        out_specs=full(M, HEAD_PAD),
        compiler_params=pltpu.CompilerParams(dimension_semantics=("arbitrary",)),
    )(emb2, add_mask, rope, params["proj"], params["w2"], params["blk_norm"],
      params["final_norm"], params["w_head"], params["b_head"])

    return out.reshape(B, S, HEAD_PAD)[:, :, :VOCAB_SIZE]


# ----------------------------- params / constants -----------------------------
def _rope_slab():
    """(S, 96) f32 slab [cos_q|sin_q|cos_k|sin_k], halves-grouped lane layout,
    with the rotate_half sign folded into the sin tables."""
    inv_freq = 1.0 / (10000.0 ** (jnp.arange(HALF, dtype=jnp.float32) / HALF))
    ang = jnp.arange(MAX_SEQ_LEN, dtype=jnp.float32)[:, None] * inv_freq[None, :]  # (S, HALF)
    c, s = jnp.cos(ang), jnp.sin(ang)
    cos_q = jnp.tile(c, (1, 2 * NUM_HEADS))                                        # (S, 32)
    sin_q = jnp.concatenate([-jnp.tile(s, (1, NUM_HEADS)),
                             jnp.tile(s, (1, NUM_HEADS))], axis=-1)                # (S, 32)
    cos_k = jnp.tile(c, (1, 2 * NUM_GROUPS))                                       # (S, 16)
    sin_k = jnp.concatenate([-jnp.tile(s, (1, NUM_GROUPS)),
                             jnp.tile(s, (1, NUM_GROUPS))], axis=-1)               # (S, 16)
    return jnp.concatenate([cos_q, sin_q, cos_k, sin_k], axis=-1)                  # (S, 96)


def _halves_grouped(w, n_heads):
    """Permute projection output columns so all heads' first halves come first,
    then all second halves (rotate_half becomes a half-width lane swap)."""
    nb, d, _ = w.shape
    wr = w.reshape(nb, d, n_heads, 2, HALF)          # (nb, d, head, half_id, elem)
    return wr.transpose(0, 1, 3, 2, 4).reshape(nb, d, n_heads * HEAD_SIZE)


def init_params(key):
    def nrm(k, shape):
        return 0.02 * jax.random.normal(k, shape, jnp.float32)

    keys = jax.random.split(key, 9)
    # logical (PyTorch-layout) weights
    embedding  = nrm(keys[0], (VOCAB_SIZE, EMBED_DIM))
    wq = nrm(keys[1], (NUM_BLOCKS, EMBED_DIM, Q_WIDTH))
    wk = nrm(keys[2], (NUM_BLOCKS, EMBED_DIM, KV_WIDTH))
    wv = nrm(keys[3], (NUM_BLOCKS, EMBED_DIM, KV_WIDTH))
    wo = nrm(keys[4], (NUM_BLOCKS, Q_WIDTH, OUT_SIZE))
    w1 = nrm(keys[5], (NUM_BLOCKS, OUT_SIZE, FF_HIDDEN))      # gate proj (bias-free)
    w3 = nrm(keys[6], (NUM_BLOCKS, OUT_SIZE, FF_HIDDEN))      # up proj
    w2 = nrm(keys[7], (NUM_BLOCKS, FF_HIDDEN, OUT_SIZE))      # down proj
    attn_norm  = jnp.ones((NUM_BLOCKS, 1, EMBED_DIM), jnp.float32)
    ffn_norm   = jnp.ones((NUM_BLOCKS, 1, OUT_SIZE), jnp.float32)
    final_norm = jnp.ones((1, OUT_SIZE), jnp.float32)
    w_head     = nrm(keys[8], (OUT_SIZE, VOCAB_SIZE))
    b_head     = jnp.zeros((VOCAB_SIZE,), jnp.float32)

    # ---- pack into kernel operands (bf16 matmul weights, lane-dense slabs) ----
    wq_p = _halves_grouped(wq, NUM_HEADS)
    wk_p = _halves_grouped(wk, NUM_GROUPS)
    proj = jnp.concatenate([w1, w3, wq_p, wk_p, wv, wo], axis=-1).astype(jnp.bfloat16)
    assert proj.shape == (NUM_BLOCKS, EMBED_DIM, PROJ_WIDTH)

    blk_norm = jnp.concatenate([attn_norm, ffn_norm], axis=-1)          # (NB, 1, 64)
    w_head_pad = (jnp.zeros((OUT_SIZE, HEAD_PAD), jnp.float32)
                  .at[:, :VOCAB_SIZE].set(w_head).astype(jnp.bfloat16)) # (32, 128)
    b_head_pad = jnp.zeros((1, HEAD_PAD), jnp.float32).at[0, :VOCAB_SIZE].set(b_head)

    return {
        "embedding": embedding,
        "proj": proj,
        "w2": w2.astype(jnp.bfloat16),
        "blk_norm": blk_norm,
        "final_norm": final_norm,
        "w_head": w_head_pad,
        "b_head": b_head_pad,
        "rope": _rope_slab(),
    }
    # TODO(synk): training-mode dropout (p=0.5) is not implemented; inference path only.


# ----------------------------- main -------------------------------------------
if __name__ == "__main__":
    key = jax.random.PRNGKey(0)
    pkey, tkey = jax.random.split(key)
    params = init_params(pkey)
    tokens = jax.random.randint(tkey, (BATCH, SEQ), 0, VOCAB_SIZE, dtype=jnp.int32)

    logits = llama_forward(params, tokens, mask=None)
    logits = jax.block_until_ready(logits)

    assert logits.shape == (BATCH, SEQ, VOCAB_SIZE), logits.shape
    assert bool(jnp.all(jnp.isfinite(logits))), "non-finite logits"
    print("KERNEL_OK")
</pallas_src>

<mosaic_0001>
module attributes {stable_mosaic.version = 11 : i64} {
  func.func @_llama_fwd_kernel(%arg0: i32, %arg1: memref<16x32xf32, #tpu.memory_space<vmem>>, %arg2: memref<16x16xf32, #tpu.memory_space<vmem>>, %arg3: memref<16x96xf32, #tpu.memory_space<vmem>>, %arg4: memref<2x32x224xbf16, #tpu.memory_space<vmem>>, %arg5: memref<2x64x32xbf16, #tpu.memory_space<vmem>>, %arg6: memref<2x1x64xf32, #tpu.memory_space<vmem>>, %arg7: memref<1x32xf32, #tpu.memory_space<vmem>>, %arg8: memref<32x128xbf16, #tpu.memory_space<vmem>>, %arg9: memref<1x128xf32, #tpu.memory_space<vmem>>, %arg10: memref<16x128xf32, #tpu.memory_space<vmem>>) attributes {dimension_semantics = [#tpu.dimension_semantics<arbitrary>], iteration_bounds = array<i64: 1>, scalar_prefetch = 0 : i64, scratch_operands = 0 : i64, tpu.core_type = #tpu.core_type<tc>, window_params = [{pipeline_mode = #tpu.pipeline_mode<synchronous>, transform_indices = @transform_0, window_bounds = array<i64: 16, 32>}, {pipeline_mode = #tpu.pipeline_mode<synchronous>, transform_indices = @transform_1, window_bounds = array<i64: 16, 16>}, {pipeline_mode = #tpu.pipeline_mode<synchronous>, transform_indices = @transform_2, window_bounds = array<i64: 16, 96>}, {pipeline_mode = #tpu.pipeline_mode<synchronous>, transform_indices = @transform_3, window_bounds = array<i64: 2, 32, 224>}, {pipeline_mode = #tpu.pipeline_mode<synchronous>, transform_indices = @transform_4, window_bounds = array<i64: 2, 64, 32>}, {pipeline_mode = #tpu.pipeline_mode<synchronous>, transform_indices = @transform_5, window_bounds = array<i64: 2, 1, 64>}, {pipeline_mode = #tpu.pipeline_mode<synchronous>, transform_indices = @transform_6, window_bounds = array<i64: 1, 32>}, {pipeline_mode = #tpu.pipeline_mode<synchronous>, transform_indices = @transform_7, window_bounds = array<i64: 32, 128>}, {pipeline_mode = #tpu.pipeline_mode<synchronous>, transform_indices = @transform_8, window_bounds = array<i64: 1, 128>}, {pipeline_mode = #tpu.pipeline_mode<synchronous>, transform_indices = @transform_9, window_bounds = array<i64: 16, 128>}]} {
    %c0 = arith.constant 0 : index
    %c0_0 = arith.constant 0 : index
    %0 = vector.load %arg1[%c0, %c0_0] : memref<16x32xf32, #tpu.memory_space<vmem>>, vector<16x32xf32>
    %c0_1 = arith.constant 0 : index
    %c0_2 = arith.constant 0 : index
    %1 = vector.load %arg2[%c0_1, %c0_2] : memref<16x16xf32, #tpu.memory_space<vmem>>, vector<16x16xf32>
    %c0_3 = arith.constant 0 : index
    %c0_4 = arith.constant 0 : index
    %2 = vector.load %arg3[%c0_3, %c0_4] : memref<16x96xf32, #tpu.memory_space<vmem>>, vector<16x96xf32>
    %3 = vector.extract_strided_slice %2 {offsets = [0, 0], sizes = [16, 32], strides = [1, 1]} : vector<16x96xf32> to vector<16x32xf32>
    %4 = vector.extract_strided_slice %2 {offsets = [0, 32], sizes = [16, 32], strides = [1, 1]} : vector<16x96xf32> to vector<16x32xf32>
    %5 = vector.extract_strided_slice %2 {offsets = [0, 64], sizes = [16, 16], strides = [1, 1]} : vector<16x96xf32> to vector<16x16xf32>
    %6 = vector.extract_strided_slice %2 {offsets = [0, 80], sizes = [16, 16], strides = [1, 1]} : vector<16x96xf32> to vector<16x16xf32>
    %7 = tpu.concatenate %1, %1 in 0 : vector<16x16xf32>, vector<16x16xf32> -> vector<32x16xf32>
    %c0_5 = arith.constant 0 : index
    %c0_6 = arith.constant 0 : index
    %c0_7 = arith.constant 0 : index
    %8 = vector.load %arg4[%c0_5, %c0_6, %c0_7] : memref<2x32x224xbf16, #tpu.memory_space<vmem>>, vector<1x32x224xbf16>
    %9 = vector.shape_cast %8 : vector<1x32x224xbf16> to vector<32x224xbf16>
    %c0_8 = arith.constant 0 : index
    %c0_9 = arith.constant 0 : index
    %c0_10 = arith.constant 0 : index
    %10 = vector.load %arg6[%c0_8, %c0_9, %c0_10] : memref<2x1x64xf32, #tpu.memory_space<vmem>>, vector<1x1x64xf32>
    %11 = vector.shape_cast %10 : vector<1x1x64xf32> to vector<1x64xf32>
    %12 = vector.extract_strided_slice %11 {offsets = [0, 0], sizes = [1, 32], strides = [1, 1]} : vector<1x64xf32> to vector<1x32xf32>
    %13 = arith.mulf %0, %0 : vector<16x32xf32>
    %cst = arith.constant dense<0.000000e+00> : vector<16xf32>
    %14 = vector.multi_reduction <add>, %13, %cst [1] : vector<16x32xf32> to vector<16xf32>
    %15 = vector.shape_cast %14 : vector<16xf32> to vector<16x1xf32>
    %cst_11 = arith.constant 3.200000e+01 : f32
    %16 = vector.broadcast %cst_11 : f32 to vector<16x1xf32>
    %17 = arith.divf %15, %16 : vector<16x1xf32>
    %cst_12 = arith.constant 1.1920929E-7 : f32
    %18 = vector.broadcast %cst_12 : f32 to vector<16x1xf32>
    %19 = arith.addf %17, %18 : vector<16x1xf32>
    %20 = math.rsqrt %19 : vector<16x1xf32>
    %21 = vector.broadcast %20 : vector<16x1xf32> to vector<16x32xf32>
    %22 = arith.mulf %0, %21 : vector<16x32xf32>
    %23 = vector.broadcast %12 : vector<1x32xf32> to vector<16x32xf32>
    %24 = arith.mulf %22, %23 : vector<16x32xf32>
    %25 = arith.truncf %24 : vector<16x32xf32> to vector<16x32xbf16>
    %26 = vector.extract_strided_slice %9 {offsets = [0, 128], sizes = [32, 64], strides = [1, 1]} : vector<32x224xbf16> to vector<32x64xbf16>
    %cst_13 = arith.constant dense<0.000000e+00> : vector<16x64xf32>
    %27 = tpu.matmul %25, %26, %cst_13 {dimension_numbers = #tpu.dot_dimension_numbers<[1], [0], [0], [1], [0, 0, 1, 1], [], []>} : vector<16x32xbf16>, vector<32x64xbf16>, vector<16x64xf32> -> vector<16x64xf32>
    %28 = vector.extract_strided_slice %27 {offsets = [0, 0], sizes = [16, 32], strides = [1, 1]} : vector<16x64xf32> to vector<16x32xf32>
    %29 = vector.extract_strided_slice %27 {offsets = [0, 32], sizes = [16, 16], strides = [1, 1]} : vector<16x64xf32> to vector<16x16xf32>
    %30 = vector.extract_strided_slice %27 {offsets = [0, 48], sizes = [16, 16], strides = [1, 1]} : vector<16x64xf32> to vector<16x16xf32>
    %31 = arith.mulf %28, %3 : vector<16x32xf32>
    %32 = vector.extract_strided_slice %28 {offsets = [0, 16], sizes = [16, 16], strides = [1, 1]} : vector<16x32xf32> to vector<16x16xf32>
    %33 = vector.extract_strided_slice %28 {offsets = [0, 0], sizes = [16, 16], strides = [1, 1]} : vector<16x32xf32> to vector<16x16xf32>
    %34 = tpu.concatenate %32, %33 in 1 : vector<16x16xf32>, vector<16x16xf32> -> vector<16x32xf32>
    %35 = arith.mulf %34, %4 : vector<16x32xf32>
    %36 = arith.addf %31, %35 : vector<16x32xf32>
    %37 = arith.mulf %29, %5 : vector<16x16xf32>
    %38 = vector.extract_strided_slice %29 {offsets = [0, 8], sizes = [16, 8], strides = [1, 1]} : vector<16x16xf32> to vector<16x8xf32>
    %39 = vector.extract_strided_slice %29 {offsets = [0, 0], sizes = [16, 8], strides = [1, 1]} : vector<16x16xf32> to vector<16x8xf32>
    %40 = tpu.concatenate %38, %39 in 1 : vector<16x8xf32>, vector<16x8xf32> -> vector<16x16xf32>
    %41 = arith.mulf %40, %6 : vector<16x16xf32>
    %42 = arith.addf %37, %41 : vector<16x16xf32>
    %43 = vector.extract_strided_slice %36 {offsets = [0, 0], sizes = [16, 4], strides = [1, 1]} : vector<16x32xf32> to vector<16x4xf32>
    %44 = vector.extract_strided_slice %36 {offsets = [0, 16], sizes = [16, 4], strides = [1, 1]} : vector<16x32xf32> to vector<16x4xf32>
    %45 = tpu.concatenate %43, %44 in 1 : vector<16x4xf32>, vector<16x4xf32> -> vector<16x8xf32>
    %46 = vector.extract_strided_slice %36 {offsets = [0, 4], sizes = [16, 4], strides = [1, 1]} : vector<16x32xf32> to vector<16x4xf32>
    %47 = vector.extract_strided_slice %36 {offsets = [0, 20], sizes = [16, 4], strides = [1, 1]} : vector<16x32xf32> to vector<16x4xf32>
    %48 = tpu.concatenate %46, %47 in 1 : vector<16x4xf32>, vector<16x4xf32> -> vector<16x8xf32>
    %49 = tpu.concatenate %45, %48 in 0 : vector<16x8xf32>, vector<16x8xf32> -> vector<32x8xf32>
    %50 = vector.extract_strided_slice %42 {offsets = [0, 0], sizes = [16, 4], strides = [1, 1]} : vector<16x16xf32> to vector<16x4xf32>
    %51 = vector.extract_strided_slice %42 {offsets = [0, 8], sizes = [16, 4], strides = [1, 1]} : vector<16x16xf32> to vector<16x4xf32>
    %52 = tpu.concatenate %50, %51 in 1 : vector<16x4xf32>, vector<16x4xf32> -> vector<16x8xf32>
    %53 = vector.extract_strided_slice %30 {offsets = [0, 0], sizes = [16, 8], strides = [1, 1]} : vector<16x16xf32> to vector<16x8xf32>
    %54 = tpu.transpose %52, [1, 0] : vector<16x8xf32> -> vector<8x16xf32>
    %cst_14 = arith.constant dense<0.000000e+00> : vector<32x16xf32>
    %55 = tpu.matmul %49, %54, %cst_14 {dimension_numbers = #tpu.dot_dimension_numbers<[1], [0], [0], [1], [0, 0, 1, 1], [], []>} : vector<32x8xf32>, vector<8x16xf32>, vector<32x16xf32> -> vector<32x16xf32>
    %cst_15 = arith.constant 0.353553385 : f32
    %56 = vector.broadcast %cst_15 : f32 to vector<32x16xf32>
    %57 = arith.mulf %55, %56 : vector<32x16xf32>
    %58 = arith.addf %57, %7 : vector<32x16xf32>
    %cst_16 = arith.constant dense<0xFF800000> : vector<32xf32>
    %59 = vector.multi_reduction <maximumf>, %58, %cst_16 [1] : vector<32x16xf32> to vector<32xf32>
    %60 = vector.shape_cast %59 : vector<32xf32> to vector<32x1xf32>
    %61 = vector.broadcast %60 : vector<32x1xf32> to vector<32x16xf32>
    %62 = arith.subf %58, %61 : vector<32x16xf32>
    %63 = math.exp %62 : vector<32x16xf32>
    %cst_17 = arith.constant dense<0.000000e+00> : vector<32xf32>
    %64 = vector.multi_reduction <add>, %63, %cst_17 [1] : vector<32x16xf32> to vector<32xf32>
    %65 = vector.shape_cast %64 : vector<32xf32> to vector<32x1xf32>
    %66 = tpu.reciprocal %65 {approx = true} : vector<32x1xf32> -> vector<32x1xf32>
    %67 = vector.broadcast %66 : vector<32x1xf32> to vector<32x16xf32>
    %68 = arith.mulf %63, %67 : vector<32x16xf32>
    %cst_18 = arith.constant dense<0.000000e+00> : vector<32x8xf32>
    %69 = tpu.matmul %68, %53, %cst_18 {dimension_numbers = #tpu.dot_dimension_numbers<[1], [0], [0], [1], [0, 0, 1, 1], [], []>} : vector<32x16xf32>, vector<16x8xf32>, vector<32x8xf32> -> vector<32x8xf32>
    %70 = vector.extract_strided_slice %69 {offsets = [0, 0], sizes = [16, 8], strides = [1, 1]} : vector<32x8xf32> to vector<16x8xf32>
    %71 = vector.extract_strided_slice %69 {offsets = [16, 0], sizes = [16, 8], strides = [1, 1]} : vector<32x8xf32> to vector<16x8xf32>
    %72 = vector.extract_strided_slice %36 {offsets = [0, 8], sizes = [16, 4], strides = [1, 1]} : vector<16x32xf32> to vector<16x4xf32>
    %73 = vector.extract_strided_slice %36 {offsets = [0, 24], sizes = [16, 4], strides = [1, 1]} : vector<16x32xf32> to vector<16x4xf32>
    %74 = tpu.concatenate %72, %73 in 1 : vector<16x4xf32>, vector<16x4xf32> -> vector<16x8xf32>
    %75 = vector.extract_strided_slice %36 {offsets = [0, 12], sizes = [16, 4], strides = [1, 1]} : vector<16x32xf32> to vector<16x4xf32>
    %76 = vector.extract_strided_slice %36 {offsets = [0, 28], sizes = [16, 4], strides = [1, 1]} : vector<16x32xf32> to vector<16x4xf32>
    %77 = tpu.concatenate %75, %76 in 1 : vector<16x4xf32>, vector<16x4xf32> -> vector<16x8xf32>
    %78 = tpu.concatenate %74, %77 in 0 : vector<16x8xf32>, vector<16x8xf32> -> vector<32x8xf32>
    %79 = vector.extract_strided_slice %42 {offsets = [0, 4], sizes = [16, 4], strides = [1, 1]} : vector<16x16xf32> to vector<16x4xf32>
    %80 = vector.extract_strided_slice %42 {offsets = [0, 12], sizes = [16, 4], strides = [1, 1]} : vector<16x16xf32> to vector<16x4xf32>
    %81 = tpu.concatenate %79, %80 in 1 : vector<16x4xf32>, vector<16x4xf32> -> vector<16x8xf32>
    %82 = vector.extract_strided_slice %30 {offsets = [0, 8], sizes = [16, 8], strides = [1, 1]} : vector<16x16xf32> to vector<16x8xf32>
    %83 = tpu.transpose %81, [1, 0] : vector<16x8xf32> -> vector<8x16xf32>
    %cst_19 = arith.constant dense<0.000000e+00> : vector<32x16xf32>
    %84 = tpu.matmul %78, %83, %cst_19 {dimension_numbers = #tpu.dot_dimension_numbers<[1], [0], [0], [1], [0, 0, 1, 1], [], []>} : vector<32x8xf32>, vector<8x16xf32>, vector<32x16xf32> -> vector<32x16xf32>
    %cst_20 = arith.constant 0.353553385 : f32
    %85 = vector.broadcast %cst_20 : f32 to vector<32x16xf32>
    %86 = arith.mulf %84, %85 : vector<32x16xf32>
    %87 = arith.addf %86, %7 : vector<32x16xf32>
    %cst_21 = arith.constant dense<0xFF800000> : vector<32xf32>
    %88 = vector.multi_reduction <maximumf>, %87, %cst_21 [1] : vector<32x16xf32> to vector<32xf32>
    %89 = vector.shape_cast %88 : vector<32xf32> to vector<32x1xf32>
    %90 = vector.broadcast %89 : vector<32x1xf32> to vector<32x16xf32>
    %91 = arith.subf %87, %90 : vector<32x16xf32>
    %92 = math.exp %91 : vector<32x16xf32>
    %cst_22 = arith.constant dense<0.000000e+00> : vector<32xf32>
    %93 = vector.multi_reduction <add>, %92, %cst_22 [1] : vector<32x16xf32> to vector<32xf32>
    %94 = vector.shape_cast %93 : vector<32xf32> to vector<32x1xf32>
    %95 = tpu.reciprocal %94 {approx = true} : vector<32x1xf32> -> vector<32x1xf32>
    %96 = vector.broadcast %95 : vector<32x1xf32> to vector<32x16xf32>
    %97 = arith.mulf %92, %96 : vector<32x16xf32>
    %cst_23 = arith.constant dense<0.000000e+00> : vector<32x8xf32>
    %98 = tpu.matmul %97, %82, %cst_23 {dimension_numbers = #tpu.dot_dimension_numbers<[1], [0], [0], [1], [0, 0, 1, 1], [], []>} : vector<32x16xf32>, vector<16x8xf32>, vector<32x8xf32> -> vector<32x8xf32>
    %99 = vector.extract_strided_slice %98 {offsets = [0, 0], sizes = [16, 8], strides = [1, 1]} : vector<32x8xf32> to vector<16x8xf32>
    %100 = vector.extract_strided_slice %98 {offsets = [16, 0], sizes = [16, 8], strides = [1, 1]} : vector<32x8xf32> to vector<16x8xf32>
    %101 = tpu.concatenate %70, %71, %99, %100 in 1 : vector<16x8xf32>, vector<16x8xf32>, vector<16x8xf32>, vector<16x8xf32> -> vector<16x32xf32>
    %102 = arith.truncf %101 : vector<16x32xf32> to vector<16x32xbf16>
    %103 = vector.extract_strided_slice %9 {offsets = [0, 192], sizes = [32, 32], strides = [1, 1]} : vector<32x224xbf16> to vector<32x32xbf16>
    %cst_24 = arith.constant dense<0.000000e+00> : vector<16x32xf32>
    %104 = tpu.matmul %102, %103, %cst_24 {dimension_numbers = #tpu.dot_dimension_numbers<[1], [0], [0], [1], [0, 0, 1, 1], [], []>} : vector<16x32xbf16>, vector<32x32xbf16>, vector<16x32xf32> -> vector<16x32xf32>
    %105 = arith.addf %0, %104 : vector<16x32xf32>
    %106 = vector.extract_strided_slice %11 {offsets = [0, 32], sizes = [1, 32], strides = [1, 1]} : vector<1x64xf32> to vector<1x32xf32>
    %107 = arith.mulf %105, %105 : vector<16x32xf32>
    %cst_25 = arith.constant dense<0.000000e+00> : vector<16xf32>
    %108 = vector.multi_reduction <add>, %107, %cst_25 [1] : vector<16x32xf32> to vector<16xf32>
    %109 = vector.shape_cast %108 : vector<16xf32> to vector<16x1xf32>
    %cst_26 = arith.constant 3.200000e+01 : f32
    %110 = vector.broadcast %cst_26 : f32 to vector<16x1xf32>
    %111 = arith.divf %109, %110 : vector<16x1xf32>
    %cst_27 = arith.constant 1.1920929E-7 : f32
    %112 = vector.broadcast %cst_27 : f32 to vector<16x1xf32>
    %113 = arith.addf %111, %112 : vector<16x1xf32>
    %114 = math.rsqrt %113 : vector<16x1xf32>
    %115 = vector.broadcast %114 : vector<16x1xf32> to vector<16x32xf32>
    %116 = arith.mulf %105, %115 : vector<16x32xf32>
    %117 = vector.broadcast %106 : vector<1x32xf32> to vector<16x32xf32>
    %118 = arith.mulf %116, %117 : vector<16x32xf32>
    %119 = arith.truncf %118 : vector<16x32xf32> to vector<16x32xbf16>
    %120 = vector.extract_strided_slice %9 {offsets = [0, 0], sizes = [32, 128], strides = [1, 1]} : vector<32x224xbf16> to vector<32x128xbf16>
    %cst_28 = arith.constant dense<0.000000e+00> : vector<16x128xf32>
    %121 = tpu.matmul %119, %120, %cst_28 {dimension_numbers = #tpu.dot_dimension_numbers<[1], [0], [0], [1], [0, 0, 1, 1], [], []>} : vector<16x32xbf16>, vector<32x128xbf16>, vector<16x128xf32> -> vector<16x128xf32>
    %122 = vector.extract_strided_slice %121 {offsets = [0, 0], sizes = [16, 64], strides = [1, 1]} : vector<16x128xf32> to vector<16x64xf32>
    %123 = vector.extract_strided_slice %121 {offsets = [0, 64], sizes = [16, 64], strides = [1, 1]} : vector<16x128xf32> to vector<16x64xf32>
    %cst_29 = arith.constant 0.000000e+00 : f32
    %124 = vector.broadcast %cst_29 : f32 to vector<16x64xf32>
    %125 = arith.subf %124, %122 : vector<16x64xf32>
    %126 = math.exp %125 : vector<16x64xf32>
    %cst_30 = arith.constant 1.000000e+00 : f32
    %127 = vector.broadcast %cst_30 : f32 to vector<16x64xf32>
    %128 = arith.addf %127, %126 : vector<16x64xf32>
    %cst_31 = arith.constant 1.000000e+00 : f32
    %129 = vector.broadcast %cst_31 : f32 to vector<16x64xf32>
    %130 = arith.divf %129, %128 : vector<16x64xf32>
    %131 = arith.mulf %122, %130 : vector<16x64xf32>
    %132 = arith.mulf %131, %123 : vector<16x64xf32>
    %133 = arith.truncf %132 : vector<16x64xf32> to vector<16x64xbf16>
    %c0_32 = arith.constant 0 : index
    %c0_33 = arith.constant 0 : index
    %c0_34 = arith.constant 0 : index
    %134 = vector.load %arg5[%c0_32, %c0_33, %c0_34] : memref<2x64x32xbf16, #tpu.memory_space<vmem>>, vector<1x64x32xbf16>
    %135 = vector.shape_cast %134 : vector<1x64x32xbf16> to vector<64x32xbf16>
    %cst_35 = arith.constant dense<0.000000e+00> : vector<16x32xf32>
    %136 = tpu.matmul %133, %135, %cst_35 {dimension_numbers = #tpu.dot_dimension_numbers<[1], [0], [0], [1], [0, 0, 1, 1], [], []>} : vector<16x64xbf16>, vector<64x32xbf16>, vector<16x32xf32> -> vector<16x32xf32>
    %137 = arith.addf %105, %136 : vector<16x32xf32>
    %c1 = arith.constant 1 : index
    %c0_36 = arith.constant 0 : index
    %c0_37 = arith.constant 0 : index
    %138 = vector.load %arg4[%c1, %c0_36, %c0_37] : memref<2x32x224xbf16, #tpu.memory_space<vmem>>, vector<1x32x224xbf16>
    %139 = vector.shape_cast %138 : vector<1x32x224xbf16> to vector<32x224xbf16>
    %c1_38 = arith.constant 1 : index
    %c0_39 = arith.constant 0 : index
    %c0_40 = arith.constant 0 : index
    %140 = vector.load %arg6[%c1_38, %c0_39, %c0_40] : memref<2x1x64xf32, #tpu.memory_space<vmem>>, vector<1x1x64xf32>
    %141 = vector.shape_cast %140 : vector<1x1x64xf32> to vector<1x64xf32>
    %142 = vector.extract_strided_slice %141 {offsets = [0, 0], sizes = [1, 32], strides = [1, 1]} : vector<1x64xf32> to vector<1x32xf32>
    %143 = arith.mulf %137, %137 : vector<16x32xf32>
    %cst_41 = arith.constant dense<0.000000e+00> : vector<16xf32>
    %144 = vector.multi_reduction <add>, %143, %cst_41 [1] : vector<16x32xf32> to vector<16xf32>
    %145 = vector.shape_cast %144 : vector<16xf32> to vector<16x1xf32>
    %cst_42 = arith.constant 3.200000e+01 : f32
    %146 = vector.broadcast %cst_42 : f32 to vector<16x1xf32>
    %147 = arith.divf %145, %146 : vector<16x1xf32>
    %cst_43 = arith.constant 1.1920929E-7 : f32
    %148 = vector.broadcast %cst_43 : f32 to vector<16x1xf32>
    %149 = arith.addf %147, %148 : vector<16x1xf32>
    %150 = math.rsqrt %149 : vector<16x1xf32>
    %151 = vector.broadcast %150 : vector<16x1xf32> to vector<16x32xf32>
    %152 = arith.mulf %137, %151 : vector<16x32xf32>
    %153 = vector.broadcast %142 : vector<1x32xf32> to vector<16x32xf32>
    %154 = arith.mulf %152, %153 : vector<16x32xf32>
    %155 = arith.truncf %154 : vector<16x32xf32> to vector<16x32xbf16>
    %156 = vector.extract_strided_slice %139 {offsets = [0, 128], sizes = [32, 64], strides = [1, 1]} : vector<32x224xbf16> to vector<32x64xbf16>
    %cst_44 = arith.constant dense<0.000000e+00> : vector<16x64xf32>
    %157 = tpu.matmul %155, %156, %cst_44 {dimension_numbers = #tpu.dot_dimension_numbers<[1], [0], [0], [1], [0, 0, 1, 1], [], []>} : vector<16x32xbf16>, vector<32x64xbf16>, vector<16x64xf32> -> vector<16x64xf32>
    %158 = vector.extract_strided_slice %157 {offsets = [0, 0], sizes = [16, 32], strides = [1, 1]} : vector<16x64xf32> to vector<16x32xf32>
    %159 = vector.extract_strided_slice %157 {offsets = [0, 32], sizes = [16, 16], strides = [1, 1]} : vector<16x64xf32> to vector<16x16xf32>
    %160 = vector.extract_strided_slice %157 {offsets = [0, 48], sizes = [16, 16], strides = [1, 1]} : vector<16x64xf32> to vector<16x16xf32>
    %161 = arith.mulf %158, %3 : vector<16x32xf32>
    %162 = vector.extract_strided_slice %158 {offsets = [0, 16], sizes = [16, 16], strides = [1, 1]} : vector<16x32xf32> to vector<16x16xf32>
    %163 = vector.extract_strided_slice %158 {offsets = [0, 0], sizes = [16, 16], strides = [1, 1]} : vector<16x32xf32> to vector<16x16xf32>
    %164 = tpu.concatenate %162, %163 in 1 : vector<16x16xf32>, vector<16x16xf32> -> vector<16x32xf32>
    %165 = arith.mulf %164, %4 : vector<16x32xf32>
    %166 = arith.addf %161, %165 : vector<16x32xf32>
    %167 = arith.mulf %159, %5 : vector<16x16xf32>
    %168 = vector.extract_strided_slice %159 {offsets = [0, 8], sizes = [16, 8], strides = [1, 1]} : vector<16x16xf32> to vector<16x8xf32>
    %169 = vector.extract_strided_slice %159 {offsets = [0, 0], sizes = [16, 8], strides = [1, 1]} : vector<16x16xf32> to vector<16x8xf32>
    %170 = tpu.concatenate %168, %169 in 1 : vector<16x8xf32>, vector<16x8xf32> -> vector<16x16xf32>
    %171 = arith.mulf %170, %6 : vector<16x16xf32>
    %172 = arith.addf %167, %171 : vector<16x16xf32>
    %173 = vector.extract_strided_slice %166 {offsets = [0, 0], sizes = [16, 4], strides = [1, 1]} : vector<16x32xf32> to vector<16x4xf32>
    %174 = vector.extract_strided_slice %166 {offsets = [0, 16], sizes = [16, 4], strides = [1, 1]} : vector<16x32xf32> to vector<16x4xf32>
    %175 = tpu.concatenate %173, %174 in 1 : vector<16x4xf32>, vector<16x4xf32> -> vector<16x8xf32>
    %176 = vector.extract_strided_slice %166 {offsets = [0, 4], sizes = [16, 4], strides = [1, 1]} : vector<16x32xf32> to vector<16x4xf32>
    %177 = vector.extract_strided_slice %166 {offsets = [0, 20], sizes = [16, 4], strides = [1, 1]} : vector<16x32xf32> to vector<16x4xf32>
    %178 = tpu.concatenate %176, %177 in 1 : vector<16x4xf32>, vector<16x4xf32> -> vector<16x8xf32>
    %179 = tpu.concatenate %175, %178 in 0 : vector<16x8xf32>, vector<16x8xf32> -> vector<32x8xf32>
    %180 = vector.extract_strided_slice %172 {offsets = [0, 0], sizes = [16, 4], strides = [1, 1]} : vector<16x16xf32> to vector<16x4xf32>
    %181 = vector.extract_strided_slice %172 {offsets = [0, 8], sizes = [16, 4], strides = [1, 1]} : vector<16x16xf32> to vector<16x4xf32>
    %182 = tpu.concatenate %180, %181 in 1 : vector<16x4xf32>, vector<16x4xf32> -> vector<16x8xf32>
    %183 = vector.extract_strided_slice %160 {offsets = [0, 0], sizes = [16, 8], strides = [1, 1]} : vector<16x16xf32> to vector<16x8xf32>
    %184 = tpu.transpose %182, [1, 0] : vector<16x8xf32> -> vector<8x16xf32>
    %cst_45 = arith.constant dense<0.000000e+00> : vector<32x16xf32>
    %185 = tpu.matmul %179, %184, %cst_45 {dimension_numbers = #tpu.dot_dimension_numbers<[1], [0], [0], [1], [0, 0, 1, 1], [], []>} : vector<32x8xf32>, vector<8x16xf32>, vector<32x16xf32> -> vector<32x16xf32>
    %cst_46 = arith.constant 0.353553385 : f32
    %186 = vector.broadcast %cst_46 : f32 to vector<32x16xf32>
    %187 = arith.mulf %185, %186 : vector<32x16xf32>
    %188 = arith.addf %187, %7 : vector<32x16xf32>
    %cst_47 = arith.constant dense<0xFF800000> : vector<32xf32>
    %189 = vector.multi_reduction <maximumf>, %188, %cst_47 [1] : vector<32x16xf32> to vector<32xf32>
    %190 = vector.shape_cast %189 : vector<32xf32> to vector<32x1xf32>
    %191 = vector.broadcast %190 : vector<32x1xf32> to vector<32x16xf32>
    %192 = arith.subf %188, %191 : vector<32x16xf32>
    %193 = math.exp %192 : vector<32x16xf32>
    %cst_48 = arith.constant dense<0.000000e+00> : vector<32xf32>
    %194 = vector.multi_reduction <add>, %193, %cst_48 [1] : vector<32x16xf32> to vector<32xf32>
    %195 = vector.shape_cast %194 : vector<32xf32> to vector<32x1xf32>
    %196 = tpu.reciprocal %195 {approx = true} : vector<32x1xf32> -> vector<32x1xf32>
    %197 = vector.broadcast %196 : vector<32x1xf32> to vector<32x16xf32>
    %198 = arith.mulf %193, %197 : vector<32x16xf32>
    %cst_49 = arith.constant dense<0.000000e+00> : vector<32x8xf32>
    %199 = tpu.matmul %198, %183, %cst_49 {dimension_numbers = #tpu.dot_dimension_numbers<[1], [0], [0], [1], [0, 0, 1, 1], [], []>} : vector<32x16xf32>, vector<16x8xf32>, vector<32x8xf32> -> vector<32x8xf32>
    %200 = vector.extract_strided_slice %199 {offsets = [0, 0], sizes = [16, 8], strides = [1, 1]} : vector<32x8xf32> to vector<16x8xf32>
    %201 = vector.extract_strided_slice %199 {offsets = [16, 0], sizes = [16, 8], strides = [1, 1]} : vector<32x8xf32> to vector<16x8xf32>
    %202 = vector.extract_strided_slice %166 {offsets = [0, 8], sizes = [16, 4], strides = [1, 1]} : vector<16x32xf32> to vector<16x4xf32>
    %203 = vector.extract_strided_slice %166 {offsets = [0, 24], sizes = [16, 4], strides = [1, 1]} : vector<16x32xf32> to vector<16x4xf32>
    %204 = tpu.concatenate %202, %203 in 1 : vector<16x4xf32>, vector<16x4xf32> -> vector<16x8xf32>
    %205 = vector.extract_strided_slice %166 {offsets = [0, 12], sizes = [16, 4], strides = [1, 1]} : vector<16x32xf32> to vector<16x4xf32>
    %206 = vector.extract_strided_slice %166 {offsets = [0, 28], sizes = [16, 4], strides = [1, 1]} : vector<16x32xf32> to vector<16x4xf32>
    %207 = tpu.concatenate %205, %206 in 1 : vector<16x4xf32>, vector<16x4xf32> -> vector<16x8xf32>
    %208 = tpu.concatenate %204, %207 in 0 : vector<16x8xf32>, vector<16x8xf32> -> vector<32x8xf32>
    %209 = vector.extract_strided_slice %172 {offsets = [0, 4], sizes = [16, 4], strides = [1, 1]} : vector<16x16xf32> to vector<16x4xf32>
    %210 = vector.extract_strided_slice %172 {offsets = [0, 12], sizes = [16, 4], strides = [1, 1]} : vector<16x16xf32> to vector<16x4xf32>
    %211 = tpu.concatenate %209, %210 in 1 : vector<16x4xf32>, vector<16x4xf32> -> vector<16x8xf32>
    %212 = vector.extract_strided_slice %160 {offsets = [0, 8], sizes = [16, 8], strides = [1, 1]} : vector<16x16xf32> to vector<16x8xf32>
    %213 = tpu.transpose %211, [1, 0] : vector<16x8xf32> -> vector<8x16xf32>
    %cst_50 = arith.constant dense<0.000000e+00> : vector<32x16xf32>
    %214 = tpu.matmul %208, %213, %cst_50 {dimension_numbers = #tpu.dot_dimension_numbers<[1], [0], [0], [1], [0, 0, 1, 1], [], []>} : vector<32x8xf32>, vector<8x16xf32>, vector<32x16xf32> -> vector<32x16xf32>
    %cst_51 = arith.constant 0.353553385 : f32
    %215 = vector.broadcast %cst_51 : f32 to vector<32x16xf32>
    %216 = arith.mulf %214, %215 : vector<32x16xf32>
    %217 = arith.addf %216, %7 : vector<32x16xf32>
    %cst_52 = arith.constant dense<0xFF800000> : vector<32xf32>
    %218 = vector.multi_reduction <maximumf>, %217, %cst_52 [1] : vector<32x16xf32> to vector<32xf32>
    %219 = vector.shape_cast %218 : vector<32xf32> to vector<32x1xf32>
    %220 = vector.broadcast %219 : vector<32x1xf32> to vector<32x16xf32>
    %221 = arith.subf %217, %220 : vector<32x16xf32>
    %222 = math.exp %221 : vector<32x16xf32>
    %cst_53 = arith.constant dense<0.000000e+00> : vector<32xf32>
    %223 = vector.multi_reduction <add>, %222, %cst_53 [1] : vector<32x16xf32> to vector<32xf32>
    %224 = vector.shape_cast %223 : vector<32xf32> to vector<32x1xf32>
    %225 = tpu.reciprocal %224 {approx = true} : vector<32x1xf32> -> vector<32x1xf32>
    %226 = vector.broadcast %225 : vector<32x1xf32> to vector<32x16xf32>
    %227 = arith.mulf %222, %226 : vector<32x16xf32>
    %cst_54 = arith.constant dense<0.000000e+00> : vector<32x8xf32>
    %228 = tpu.matmul %227, %212, %cst_54 {dimension_numbers = #tpu.dot_dimension_numbers<[1], [0], [0], [1], [0, 0, 1, 1], [], []>} : vector<32x16xf32>, vector<16x8xf32>, vector<32x8xf32> -> vector<32x8xf32>
    %229 = vector.extract_strided_slice %228 {offsets = [0, 0], sizes = [16, 8], strides = [1, 1]} : vector<32x8xf32> to vector<16x8xf32>
    %230 = vector.extract_strided_slice %228 {offsets = [16, 0], sizes = [16, 8], strides = [1, 1]} : vector<32x8xf32> to vector<16x8xf32>
    %231 = tpu.concatenate %200, %201, %229, %230 in 1 : vector<16x8xf32>, vector<16x8xf32>, vector<16x8xf32>, vector<16x8xf32> -> vector<16x32xf32>
    %232 = arith.truncf %231 : vector<16x32xf32> to vector<16x32xbf16>
    %233 = vector.extract_strided_slice %139 {offsets = [0, 192], sizes = [32, 32], strides = [1, 1]} : vector<32x224xbf16> to vector<32x32xbf16>
    %cst_55 = arith.constant dense<0.000000e+00> : vector<16x32xf32>
    %234 = tpu.matmul %232, %233, %cst_55 {dimension_numbers = #tpu.dot_dimension_numbers<[1], [0], [0], [1], [0, 0, 1, 1], [], []>} : vector<16x32xbf16>, vector<32x32xbf16>, vector<16x32xf32> -> vector<16x32xf32>
    %235 = arith.addf %137, %234 : vector<16x32xf32>
    %236 = vector.extract_strided_slice %141 {offsets = [0, 32], sizes = [1, 32], strides = [1, 1]} : vector<1x64xf32> to vector<1x32xf32>
    %237 = arith.mulf %235, %235 : vector<16x32xf32>
    %cst_56 = arith.constant dense<0.000000e+00> : vector<16xf32>
    %238 = vector.multi_reduction <add>, %237, %cst_56 [1] : vector<16x32xf32> to vector<16xf32>
    %239 = vector.shape_cast %238 : vector<16xf32> to vector<16x1xf32>
    %cst_57 = arith.constant 3.200000e+01 : f32
    %240 = vector.broadcast %cst_57 : f32 to vector<16x1xf32>
    %241 = arith.divf %239, %240 : vector<16x1xf32>
    %cst_58 = arith.constant 1.1920929E-7 : f32
    %242 = vector.broadcast %cst_58 : f32 to vector<16x1xf32>
    %243 = arith.addf %241, %242 : vector<16x1xf32>
    %244 = math.rsqrt %243 : vector<16x1xf32>
    %245 = vector.broadcast %244 : vector<16x1xf32> to vector<16x32xf32>
    %246 = arith.mulf %235, %245 : vector<16x32xf32>
    %247 = vector.broadcast %236 : vector<1x32xf32> to vector<16x32xf32>
    %248 = arith.mulf %246, %247 : vector<16x32xf32>
    %249 = arith.truncf %248 : vector<16x32xf32> to vector<16x32xbf16>
    %250 = vector.extract_strided_slice %139 {offsets = [0, 0], sizes = [32, 128], strides = [1, 1]} : vector<32x224xbf16> to vector<32x128xbf16>
    %cst_59 = arith.constant dense<0.000000e+00> : vector<16x128xf32>
    %251 = tpu.matmul %249, %250, %cst_59 {dimension_numbers = #tpu.dot_dimension_numbers<[1], [0], [0], [1], [0, 0, 1, 1], [], []>} : vector<16x32xbf16>, vector<32x128xbf16>, vector<16x128xf32> -> vector<16x128xf32>
    %252 = vector.extract_strided_slice %251 {offsets = [0, 0], sizes = [16, 64], strides = [1, 1]} : vector<16x128xf32> to vector<16x64xf32>
    %253 = vector.extract_strided_slice %251 {offsets = [0, 64], sizes = [16, 64], strides = [1, 1]} : vector<16x128xf32> to vector<16x64xf32>
    %cst_60 = arith.constant 0.000000e+00 : f32
    %254 = vector.broadcast %cst_60 : f32 to vector<16x64xf32>
    %255 = arith.subf %254, %252 : vector<16x64xf32>
    %256 = math.exp %255 : vector<16x64xf32>
    %cst_61 = arith.constant 1.000000e+00 : f32
    %257 = vector.broadcast %cst_61 : f32 to vector<16x64xf32>
    %258 = arith.addf %257, %256 : vector<16x64xf32>
    %cst_62 = arith.constant 1.000000e+00 : f32
    %259 = vector.broadcast %cst_62 : f32 to vector<16x64xf32>
    %260 = arith.divf %259, %258 : vector<16x64xf32>
    %261 = arith.mulf %252, %260 : vector<16x64xf32>
    %262 = arith.mulf %261, %253 : vector<16x64xf32>
    %263 = arith.truncf %262 : vector<16x64xf32> to vector<16x64xbf16>
    %c1_63 = arith.constant 1 : index
    %c0_64 = arith.constant 0 : index
    %c0_65 = arith.constant 0 : index
    %264 = vector.load %arg5[%c1_63, %c0_64, %c0_65] : memref<2x64x32xbf16, #tpu.memory_space<vmem>>, vector<1x64x32xbf16>
    %265 = vector.shape_cast %264 : vector<1x64x32xbf16> to vector<64x32xbf16>
    %cst_66 = arith.constant dense<0.000000e+00> : vector<16x32xf32>
    %266 = tpu.matmul %263, %265, %cst_66 {dimension_numbers = #tpu.dot_dimension_numbers<[1], [0], [0], [1], [0, 0, 1, 1], [], []>} : vector<16x64xbf16>, vector<64x32xbf16>, vector<16x32xf32> -> vector<16x32xf32>
    %267 = arith.addf %235, %266 : vector<16x32xf32>
    %c0_67 = arith.constant 0 : index
    %c0_68 = arith.constant 0 : index
    %268 = vector.load %arg7[%c0_67, %c0_68] : memref<1x32xf32, #tpu.memory_space<vmem>>, vector<1x32xf32>
    %269 = arith.mulf %267, %267 : vector<16x32xf32>
    %cst_69 = arith.constant dense<0.000000e+00> : vector<16xf32>
    %270 = vector.multi_reduction <add>, %269, %cst_69 [1] : vector<16x32xf32> to vector<16xf32>
    %271 = vector.shape_cast %270 : vector<16xf32> to vector<16x1xf32>
    %cst_70 = arith.constant 3.200000e+01 : f32
    %272 = vector.broadcast %cst_70 : f32 to vector<16x1xf32>
    %273 = arith.divf %271, %272 : vector<16x1xf32>
    %cst_71 = arith.constant 1.1920929E-7 : f32
    %274 = vector.broadcast %cst_71 : f32 to vector<16x1xf32>
    %275 = arith.addf %273, %274 : vector<16x1xf32>
    %276 = math.rsqrt %275 : vector<16x1xf32>
    %277 = vector.broadcast %276 : vector<16x1xf32> to vector<16x32xf32>
    %278 = arith.mulf %267, %277 : vector<16x32xf32>
    %279 = vector.broadcast %268 : vector<1x32xf32> to vector<16x32xf32>
    %280 = arith.mulf %278, %279 : vector<16x32xf32>
    %281 = arith.truncf %280 : vector<16x32xf32> to vector<16x32xbf16>
    %c0_72 = arith.constant 0 : index
    %c0_73 = arith.constant 0 : index
    %282 = vector.load %arg8[%c0_72, %c0_73] : memref<32x128xbf16, #tpu.memory_space<vmem>>, vector<32x128xbf16>
    %cst_74 = arith.constant dense<0.000000e+00> : vector<16x128xf32>
    %283 = tpu.matmul %281, %282, %cst_74 {dimension_numbers = #tpu.dot_dimension_numbers<[1], [0], [0], [1], [0, 0, 1, 1], [], []>} : vector<16x32xbf16>, vector<32x128xbf16>, vector<16x128xf32> -> vector<16x128xf32>
    %c0_75 = arith.constant 0 : index
    %c0_76 = arith.constant 0 : index
    %284 = vector.load %arg9[%c0_75, %c0_76] : memref<1x128xf32, #tpu.memory_space<vmem>>, vector<1x128xf32>
    %285 = vector.broadcast %284 : vector<1x128xf32> to vector<16x128xf32>
    %286 = arith.addf %283, %285 : vector<16x128xf32>
    %c0_77 = arith.constant 0 : index
    %c0_78 = arith.constant 0 : index
    %287 = vector.load %arg10[%c0_77, %c0_78] : memref<16x128xf32, #tpu.memory_space<vmem>>, vector<16x128xf32>
    tpu.vector_store %arg10[%c0_77, %c0_78], %286 {strides = array<i32>} : memref<16x128xf32, #tpu.memory_space<vmem>>, vector<16x128xf32>,
    return
  }
  func.func @transform_0(%arg0: i32) -> (i32, i32) {
    %c0_i32 = arith.constant 0 : i32
    %c0_i32_0 = arith.constant 0 : i32
    %c0_i32_1 = arith.constant 0 : i32
    return %c0_i32, %c0_i32_0 : i32, i32
  }
  func.func @transform_1(%arg0: i32) -> (i32, i32) {
    %c0_i32 = arith.constant 0 : i32
    %c0_i32_0 = arith.constant 0 : i32
    %c0_i32_1 = arith.constant 0 : i32
    return %c0_i32, %c0_i32_0 : i32, i32
  }
  func.func @transform_2(%arg0: i32) -> (i32, i32) {
    %c0_i32 = arith.constant 0 : i32
    %c0_i32_0 = arith.constant 0 : i32
    %c0_i32_1 = arith.constant 0 : i32
    return %c0_i32, %c0_i32_0 : i32, i32
  }
  func.func @transform_3(%arg0: i32) -> (i32, i32, i32) {
    %c0_i32 = arith.constant 0 : i32
    %c0_i32_0 = arith.constant 0 : i32
    %c0_i32_1 = arith.constant 0 : i32
    %c0_i32_2 = arith.constant 0 : i32
    return %c0_i32, %c0_i32_0, %c0_i32_1 : i32, i32, i32
  }
  func.func @transform_4(%arg0: i32) -> (i32, i32, i32) {
    %c0_i32 = arith.constant 0 : i32
    %c0_i32_0 = arith.constant 0 : i32
    %c0_i32_1 = arith.constant 0 : i32
    %c0_i32_2 = arith.constant 0 : i32
    return %c0_i32, %c0_i32_0, %c0_i32_1 : i32, i32, i32
  }
  func.func @transform_5(%arg0: i32) -> (i32, i32, i32) {
    %c0_i32 = arith.constant 0 : i32
    %c0_i32_0 = arith.constant 0 : i32
    %c0_i32_1 = arith.constant 0 : i32
    %c0_i32_2 = arith.constant 0 : i32
    return %c0_i32, %c0_i32_0, %c0_i32_1 : i32, i32, i32
  }
  func.func @transform_6(%arg0: i32) -> (i32, i32) {
    %c0_i32 = arith.constant 0 : i32
    %c0_i32_0 = arith.constant 0 : i32
    %c0_i32_1 = arith.constant 0 : i32
    return %c0_i32, %c0_i32_0 : i32, i32
  }
  func.func @transform_7(%arg0: i32) -> (i32, i32) {
    %c0_i32 = arith.constant 0 : i32
    %c0_i32_0 = arith.constant 0 : i32
    %c0_i32_1 = arith.constant 0 : i32
    return %c0_i32, %c0_i32_0 : i32, i32
  }
  func.func @transform_8(%arg0: i32) -> (i32, i32) {
    %c0_i32 = arith.constant 0 : i32
    %c0_i32_0 = arith.constant 0 : i32
    %c0_i32_1 = arith.constant 0 : i32
    return %c0_i32, %c0_i32_0 : i32, i32
  }
  func.func @transform_9(%arg0: i32) -> (i32, i32) {
    %c0_i32 = arith.constant 0 : i32
    %c0_i32_0 = arith.constant 0 : i32
    %c0_i32_1 = arith.constant 0 : i32
    return %c0_i32, %c0_i32_0 : i32, i32
  }
}

</mosaic_0001>

<llo_original>
// kernel: tpu_custom_call.1
$region0: #{tpu_custom_call.1}
  #allocation0 [shape = 'u32[]', space=smem, size = 0x4, offset = 0x4, fixed_abs, tag = 'smem constant byte address 0x4 - core index']
  #allocation1 [shape = 'u32[144,128]{1,0:T(1,128)}', space=vmem, size = 0x12000, scoped, tag = 'internal scratch']
  %s0 = inlined_call_operand.vmem [shape: f32[16,32], index: 0, kind: input, shape index: {}]
  %s1 = inlined_call_operand.vmem [shape: f32[16,16], index: 1, kind: input, shape index: {}]
  %s2 = inlined_call_operand.hbm [shape: f32[16,96], index: 2, kind: input, shape index: {}]
  %s3 = inlined_call_operand.vmem [shape: bf16[2,32,224], index: 3, kind: input, shape index: {}]
  %s4 = inlined_call_operand.vmem [shape: bf16[2,64,32], index: 4, kind: input, shape index: {}]
  %s5 = inlined_call_operand.vmem [shape: f32[2,1,64], index: 5, kind: input, shape index: {}]
  %s6 = inlined_call_operand.vmem [shape: f32[1,32], index: 6, kind: input, shape index: {}]
  %s7 = inlined_call_operand.hbm [shape: bf16[32,128], index: 7, kind: input, shape index: {}]
  %s8 = inlined_call_operand.vmem [shape: f32[1,128], index: 8, kind: input, shape index: {}]
  %s9 = inlined_call_operand.hbm [shape: f32[16,128], index: 9, kind: output, shape index: {}]
  %s10 = sld [smem:[#allocation0]]
  $region54: #{tpu_custom_call.1} parent=0
    _
  %s12 = ssub.s32 1, %s10
  %s13 = scalar_select 0, %s12, %s10
  $region1: #{tpu_custom_call.1} parent=0
    #allocation2 [shape = 'u8[8192]{0}', space=vmem, size = 0x2000, scoped, tag = 'input window, operand 2, single buffered']
    #allocation3 [shape = 's32[1]{0}', space=sflag, size = 0x4, scoped, tag = 'scoped memory for tpu_custom_call.1']
    #allocation4 [shape = 's32[1]{0}', space=sflag, size = 0x4, scoped, tag = 'scoped memory for tpu_custom_call.1']
    #allocation5 [shape = 'u8[8192]{0}', space=vmem, size = 0x2000, scoped, tag = 'input window, operand 7, single buffered']
    #allocation6 [shape = 's32[1]{0}', space=sflag, size = 0x4, scoped, tag = 'scoped memory for tpu_custom_call.1']
    #allocation7 [shape = 'u8[8192]{0}', space=vmem, size = 0x2000, scoped, tag = 'output window, operand 0, single buffered']
    %14 = vsyncpa [#allocation3], 0
    %15 = vsyncpa [#allocation6], 0
    %16 = vsyncpa [#allocation4], 0
    // Predicated region
    $region2: #{tpu_custom_call.1} parent=1 // pred_check
      _
    $region3: #{tpu_custom_call.1} parent=1 // pred_check_branch
      %18 = sbr.rel (0) target = $region5
    $region4: #{tpu_custom_call.1} parent=1 // pred_region
      _
    $region5: #{tpu_custom_call.1} parent=1 // pred_fallthru
      _
    // Predicated region
    $region6: #{tpu_custom_call.1} parent=1 // pred_check
      _
    $region7: #{tpu_custom_call.1} parent=1 // pred_check_branch
      %20 = sbr.rel (0) target = $region9
    $region8: #{tpu_custom_call.1} parent=1 // pred_region
      _
    $region9: #{tpu_custom_call.1} parent=1 // pred_fallthru
      _
    // Predicated region
    $region10: #{tpu_custom_call.1} parent=1 // pred_check
      _
    $region11: #{tpu_custom_call.1} parent=1 // pred_check_branch
      %22 = sbr.rel (0) target = $region13
    $region12: #{tpu_custom_call.1} parent=1 // pred_region
      %s24 = ssub.s32 256, 256
      %25 = vsyncadd [#allocation3], %s24
      %s26 = sshll.u32 [#allocation2], 4
      %s27 = int_to_ptr.vmem [resolvable:$true] %s26
      %32 = dma.hbm_to_vmem [thread:$0]  %s2, 256, %s27, [#allocation3], 128, 128, 8
    $region13: #{tpu_custom_call.1} parent=1 // pred_fallthru
      _
    // Predicated region
    $region14: #{tpu_custom_call.1} parent=1 // pred_check
      _
    $region15: #{tpu_custom_call.1} parent=1 // pred_check_branch
      %34 = sbr.rel (0) target = $region17
    $region16: #{tpu_custom_call.1} parent=1 // pred_region
      _
    $region17: #{tpu_custom_call.1} parent=1 // pred_fallthru
      _
    // Predicated region
    $region18: #{tpu_custom_call.1} parent=1 // pred_check
      _
    $region19: #{tpu_custom_call.1} parent=1 // pred_check_branch
      %36 = sbr.rel (0) target = $region21
    $region20: #{tpu_custom_call.1} parent=1 // pred_region
      _
    $region21: #{tpu_custom_call.1} parent=1 // pred_fallthru
      _
    // Predicated region
    $region22: #{tpu_custom_call.1} parent=1 // pred_check
      _
    $region23: #{tpu_custom_call.1} parent=1 // pred_check_branch
      %38 = sbr.rel (0) target = $region25
    $region24: #{tpu_custom_call.1} parent=1 // pred_region
      _
    $region25: #{tpu_custom_call.1} parent=1 // pred_fallthru
      _
    // Predicated region
    $region26: #{tpu_custom_call.1} parent=1 // pred_check
      _
    $region27: #{tpu_custom_call.1} parent=1 // pred_check_branch
      %40 = sbr.rel (0) target = $region29
    $region28: #{tpu_custom_call.1} parent=1 // pred_region
      _
    $region29: #{tpu_custom_call.1} parent=1 // pred_fallthru
      _
    // Predicated region
    $region30: #{tpu_custom_call.1} parent=1 // pred_check
      _
    $region31: #{tpu_custom_call.1} parent=1 // pred_check_branch
      %42 = sbr.rel (0) target = $region33
    $region32: #{tpu_custom_call.1} parent=1 // pred_region
      %s44 = ssub.s32 256, 256
      %45 = vsyncadd [#allocation6], %s44
      %s46 = sshll.u32 [#allocation5], 4
      %s47 = int_to_ptr.vmem [resolvable:$true] %s46
      %52 = dma.hbm_to_vmem [thread:$0]  %s7, 256, %s47, [#allocation6], 64, 64, 4
    $region33: #{tpu_custom_call.1} parent=1 // pred_fallthru
      _
    // Predicated region
    $region34: #{tpu_custom_call.1} parent=1 // pred_check
      _
    $region35: #{tpu_custom_call.1} parent=1 // pred_check_branch
      %54 = sbr.rel (0) target = $region37
    $region36: #{tpu_custom_call.1} parent=1 // pred_region
      _
    $region37: #{tpu_custom_call.1} parent=1 // pred_fallthru
      _
    // Predicated region
    $region38: #{tpu_custom_call.1} parent=1 // pred_check
      _
    $region39: #{tpu_custom_call.1} parent=1 // pred_check_branch
      %56 = sbr.rel (0) target = $region41
    $region40: #{tpu_custom_call.1} parent=1 // pred_region
      %57 = dma.done [#allocation3], 256
    $region41: #{tpu_custom_call.1} parent=1 // pred_fallthru
      _
    // Predicated region
    $region42: #{tpu_custom_call.1} parent=1 // pred_check
      _
    $region43: #{tpu_custom_call.1} parent=1 // pred_check_branch
      %59 = sbr.rel (0) target = $region45
    $region44: #{tpu_custom_call.1} parent=1 // pred_region
      %60 = dma.done [#allocation6], 256
    $region45: #{tpu_custom_call.1} parent=1 // pred_fallthru
      _
    %v62 = vld [vmem:[%s0] sm:$0xff]
    %v63 = vld [vmem:[%s0 + $0x8] sm:$0xff]
    %v64 = vld [vmem:[%s1] sm:$0xff]
    %v65 = vld [vmem:[%s1 + $0x8] sm:$0xff]
    %v66 = vld [vmem:[#allocation2] sm:$0xff]
    %v67 = vld [vmem:[#allocation2 + $0x8] sm:$0xff]
    %v68 = vld [vmem:[%s3] sm:$0xff]
    %v69 = vld [vmem:[%s3 + $0x8] sm:$0xff]
    %v70 = vld [vmem:[%s3 + $0x10] sm:$0xff]
    %v71 = vld [vmem:[%s3 + $0x18] sm:$0xff]
    %v72 = vld [vmem:[%s5] sm:$0x1]
    %v73 = vmul.f32 %v62, %v62
    %v74 = vmul.f32 %v63, %v63
    %vm75 = vcmask 261120
    %v76 = vsel %vm75, %v73, 0.0
    %77 = vadd.xlane.f32.xlu0 %v76
    %v78 = vpop.xlane.xlu0 %77
    %v79 = vsel %vm75, %v74, 0.0
    %80 = vadd.xlane.f32.xlu0 %v79
    %v81 = vpop.xlane.xlu0 %80
    %v82 = vrcp.pop 32.0
    %v83 = vmul.f32 %v78, %v82
    %v84 = vmul.f32 %v81, %v82
    %v85 = vadd.f32 %v83, 1.1920929e-07
    %v86 = vadd.f32 %v84, 1.1920929e-07
    %v87 = vrsqrt.pop %v85
    %v88 = vrsqrt.pop %v86
    %v89 = vmul.f32 %v62, %v87
    %v90 = vmul.f32 %v63, %v88
    %v92 = vlaneseq
    %v93 = vshrl.u32 %v92, 7
    %v94 = vsub.s32 0, %v93
    %v95 = vrot.slane %v72, %v94
    %v97 = vmul.f32 %v89, %v95
    %v98 = vmul.f32 %v90, %v95
    %v99 = vpack.c.bf16 %v98, %v97
    %v104 = vunpack.c.h.b16 %v68
    %v105 = vunpack.c.h.b16 %v69
    %v106 = vunpack.c.h.b16 %v70
    %v107 = vunpack.c.h.b16 %v71
    %v108 = vpack.c.b16 %v105, %v104
    %v109 = vpack.c.b16 %v107, %v106
    %v113 = vsel %vm75, %v99, 0
    %115 = vmatprep.subr.bf16.mxu0 0
    %116 = vmatpush1.bf16.msra.mxu0 0
    %117 = vmatprep.subr.bf16.mxu0 0
    %118 = vmatpush1.bf16.msra.mxu0 0
    %119 = vmatprep.subr.bf16.mxu0 0
    %120 = vmatpush1.bf16.msra.mxu0 0
    %121 = vmatprep.subr.bf16.mxu0 0
    %122 = vmatpush1.bf16.msra.mxu0 0
    %123 = vmatprep.subr.bf16.mxu0 0
    %124 = vmatpush1.bf16.msra.mxu0 0
    %125 = vmatprep.subr.bf16.mxu0 0
    %126 = vmatpush1.bf16.msra.mxu0 0
    %127 = vmatprep.subr.bf16.mxu0 0
    %128 = vmatpush1.bf16.msra.mxu0 %v109
    %129 = vmatprep.subr.bf16.mxu0 0
    %130 = vmatpush1.bf16.msra.mxu0 %v108
    %131 = vmatprep.subr.bf16.mxu0 0
    %132 = vmatpush2.bf16.msra.mxu0 0
    %133 = vmatprep.subr.bf16.mxu0 0
    %134 = vmatpush2.bf16.msra.mxu0 0
    %135 = vmatprep.subr.bf16.mxu0 0
    %136 = vmatpush2.bf16.msra.mxu0 0
    %137 = vmatprep.subr.bf16.mxu0 0
    %138 = vmatpush2.bf16.msra.mxu0 0
    %139 = vmatprep.subr.bf16.mxu0 0
    %140 = vmatpush2.bf16.msra.mxu0 0
    %141 = vmatprep.subr.bf16.mxu0 0
    %142 = vmatpush2.bf16.msra.mxu0 0
    %143 = vmatprep.subr.bf16.mxu0 0
    %144 = vmatpush2.bf16.msra.mxu0 0
    %145 = vmatprep.subr.bf16.mxu0 0
    %146 = vmatpush2.bf16.msra.mxu0 0
    %147 = vmatprep.mubr.bf16.mxu0 0
    %148 = vmatmul.mubr.bf16.gmra.mxu0 %v113
    %v149 = vpop.f32.mrf.mxu0
    %v150 = vadd.f32 0.0, %v149
    %v151 = vpop.f32.mrf.mxu0
    %v152 = vpop.f32.mrf.mxu0
    %v153 = vadd.f32 0.0, %v152
    %v154 = vpop.f32.mrf.mxu0
    %155 = vdwg.mxu0
    %v156 = vmul.f32 %v150, %v66
    %v157 = vmul.f32 %v153, %v67
    %160 = vrot.lane.b32.xlu0 %v150, 112
    %v161 = vpop.permute.xlu0 %160
    %162 = vrot.lane.b32.xlu0 %v153, 112
    %v163 = vpop.permute.xlu0 %162
    %166 = vrot.lane.b32.xlu0 %v150, 16
    %v167 = vpop.permute.xlu0 %166
    %168 = vrot.lane.b32.xlu0 %v153, 16
    %v169 = vpop.permute.xlu0 %168
    %vm172 = vcmask 130048
    %v173 = vsel %vm172, %v161, %v167
    %v174 = vsel %vm172, %v163, %v169
    %177 = vrot.lane.b32.xlu0 %v66, 96
    %v178 = vpop.permute.xlu0 %177
    %179 = vrot.lane.b32.xlu0 %v67, 96
    %v180 = vpop.permute.xlu0 %179
    %v183 = vmul.f32 %v173, %v178
    %v184 = vmul.f32 %v174, %v180
    %v185 = vadd.f32 %v156, %v183
    %v186 = vadd.f32 %v157, %v184
    %v187 = vmul.f32 %v150, %v178
    %v188 = vmul.f32 %v153, %v180
    %189 = vrot.lane.b32.xlu0 %v150, 88
    %v190 = vpop.permute.xlu0 %189
    %191 = vrot.lane.b32.xlu0 %v153, 88
    %v192 = vpop.permute.xlu0 %191
    %195 = vrot.lane.b32.xlu0 %v150, 104
    %v196 = vpop.permute.xlu0 %195
    %197 = vrot.lane.b32.xlu0 %v153, 104
    %v198 = vpop.permute.xlu0 %197
    %vm201 = vcmask 64512
    %v202 = vsel %vm201, %v190, %v196
    %v203 = vsel %vm201, %v192, %v198
    %204 = vrot.lane.b32.xlu0 %v66, 48
    %v205 = vpop.permute.xlu0 %204
    %206 = vrot.lane.b32.xlu0 %v67, 48
    %v207 = vpop.permute.xlu0 %206
    %v210 = vmul.f32 %v202, %v205
    %v211 = vmul.f32 %v203, %v207
    %214 = vrot.lane.b32.xlu0 %v210, 32
    %v215 = vpop.permute.xlu0 %214
    %216 = vrot.lane.b32.xlu0 %v211, 32
    %v217 = vpop.permute.xlu0 %216
    %v220 = vadd.f32 %v187, %v215
    %v221 = vadd.f32 %v188, %v217
    %224 = vrot.lane.b32.xlu0 %v185, 116
    %v225 = vpop.permute.xlu0 %224
    %226 = vrot.lane.b32.xlu0 %v186, 116
    %v227 = vpop.permute.xlu0 %226
    %vm230 = vcmask 31744
    %v231 = vsel %vm230, %v185, %v225
    %v232 = vsel %vm230, %v186, %v227
    %233 = vrot.lane.b32.xlu0 %v185, 124
    %v234 = vpop.permute.xlu0 %233
    %235 = vrot.lane.b32.xlu0 %v186, 124
    %v236 = vpop.permute.xlu0 %235
    %239 = vrot.lane.b32.xlu0 %v185, 112
    %v240 = vpop.permute.xlu0 %239
    %241 = vrot.lane.b32.xlu0 %v186, 112
    %v242 = vpop.permute.xlu0 %241
    %v245 = vsel %vm230, %v234, %v240
    %v246 = vsel %vm230, %v236, %v242
    %249 = vrot.lane.b32.xlu0 %v220, 96
    %v250 = vpop.permute.xlu0 %249
    %251 = vrot.lane.b32.xlu0 %v221, 96
    %v252 = vpop.permute.xlu0 %251
    %255 = vrot.lane.b32.xlu0 %v220, 92
    %v256 = vpop.permute.xlu0 %255
    %257 = vrot.lane.b32.xlu0 %v221, 92
    %v258 = vpop.permute.xlu0 %257
    %v261 = vsel %vm230, %v250, %v256
    %v262 = vsel %vm230, %v252, %v258
    %v264 = vsel %vm201, %v231, 0
    %v267 = vsel %vm201, %v232, 0
    %v270 = vsel %vm201, %v245, 0
    %v273 = vsel %vm201, %v246, 0
    %v276 = vsel %vm201, %v261, 0
    %v279 = vsel %vm201, %v262, 0
    %281 = vmatprep.subr.mxu0 0.0
    %282 = vmatpush1.xpose.msra.mxu0 0.0
    %283 = vmatprep.subr.mxu0 0.0
    %284 = vmatpush1.xpose.msra.mxu0 0.0
    %285 = vmatprep.subr.mxu0 0.0
    %286 = vmatpush1.xpose.msra.mxu0 0.0
    %287 = vmatprep.subr.mxu0 0.0
    %288 = vmatpush1.xpose.msra.mxu0 0.0
    %289 = vmatprep.subr.mxu0 0.0
    %290 = vmatpush1.xpose.msra.mxu0 0.0
    %291 = vmatprep.subr.mxu0 0.0
    %292 = vmatpush1.xpose.msra.mxu0 0.0
    %293 = vmatprep.subr.mxu0 0.0
    %294 = vmatpush1.xpose.msra.mxu0 0.0
    %295 = vmatprep.subr.mxu0 0.0
    %296 = vmatpush1.xpose.msra.mxu0 0.0
    %297 = vmatprep.subr.mxu0 0.0
    %298 = vmatpush1.xpose.msra.mxu0 0.0
    %299 = vmatprep.subr.mxu0 0.0
    %300 = vmatpush1.xpose.msra.mxu0 0.0
    %301 = vmatprep.subr.mxu0 0.0
    %302 = vmatpush1.xpose.msra.mxu0 0.0
    %303 = vmatprep.subr.mxu0 0.0
    %304 = vmatpush1.xpose.msra.mxu0 0.0
    %305 = vmatprep.subr.mxu0 0.0
    %306 = vmatpush1.xpose.msra.mxu0 0.0
    %307 = vmatprep.subr.mxu0 0.0
    %308 = vmatpush1.xpose.msra.mxu0 0.0
    %309 = vmatprep.subr.mxu0 0.0
    %310 = vmatpush1.xpose.msra.mxu0 %v279
    %311 = vmatprep.subr.mxu0 0.0
    %312 = vmatpush1.xpose.msra.mxu0 %v276
    %313 = vmatprep.subr.mxu0 0.0
    %314 = vmatpush2.xpose.msra.mxu0 0.0
    %315 = vmatprep.subr.mxu0 0.0
    %316 = vmatpush2.xpose.msra.mxu0 0.0
    %317 = vmatprep.subr.mxu0 0.0
    %318 = vmatpush2.xpose.msra.mxu0 0.0
    %319 = vmatprep.subr.mxu0 0.0
    %320 = vmatpush2.xpose.msra.mxu0 0.0
    %321 = vmatprep.subr.mxu0 0.0
    %322 = vmatpush2.xpose.msra.mxu0 0.0
    %323 = vmatprep.subr.mxu0 0.0
    %324 = vmatpush2.xpose.msra.mxu0 0.0
    %325 = vmatprep.subr.mxu0 0.0
    %326 = vmatpush2.xpose.msra.mxu0 0.0
    %327 = vmatprep.subr.mxu0 0.0
    %328 = vmatpush2.xpose.msra.mxu0 0.0
    %329 = vmatprep.subr.mxu0 0.0
    %330 = vmatpush2.xpose.msra.mxu0 0.0
    %331 = vmatprep.subr.mxu0 0.0
    %332 = vmatpush2.xpose.msra.mxu0 0.0
    %333 = vmatprep.subr.mxu0 0.0
    %334 = vmatpush2.xpose.msra.mxu0 0.0
    %335 = vmatprep.subr.mxu0 0.0
    %336 = vmatpush2.xpose.msra.mxu0 0.0
    %337 = vmatprep.subr.mxu0 0.0
    %338 = vmatpush2.xpose.msra.mxu0 0.0
    %339 = vmatprep.subr.mxu0 0.0
    %340 = vmatpush2.xpose.msra.mxu0 0.0
    %341 = vmatprep.subr.mxu0 0.0
    %342 = vmatpush2.xpose.msra.mxu0 0.0
    %343 = vmatprep.subr.mxu0 0.0
    %344 = vmatpush2.xpose.msra.mxu0 0.0
    %345 = vmatprep.mubr.f32.mxu0 0.0
    %346 = vmatmul.mubr.f32.gmra.mxu0 %v264
    %v347 = vpop.f32.mrf.mxu0
    %v348 = vadd.f32 0.0, %v347
    %v349 = vpop.f32.mrf.mxu0
    %350 = vmatprep.mubr.f32.mxu0 0.0
    %351 = vmatmul.mubr.f32.gmra.mxu0 %v267
    %v352 = vpop.f32.mrf.mxu0
    %v353 = vadd.f32 0.0, %v352
    %v354 = vpop.f32.mrf.mxu0
    %355 = vmatprep.mubr.f32.mxu0 0.0
    %356 = vmatmul.mubr.f32.gmra.mxu0 %v270
    %v357 = vpop.f32.mrf.mxu0
    %v358 = vadd.f32 0.0, %v357
    %v359 = vpop.f32.mrf.mxu0
    %360 = vmatprep.mubr.f32.mxu0 0.0
    %361 = vmatmul.mubr.f32.gmra.mxu0 %v273
    %v362 = vpop.f32.mrf.mxu0
    %v363 = vadd.f32 0.0, %v362
    %v364 = vpop.f32.mrf.mxu0
    %365 = vdwg.mxu0
    %v366 = vmul.f32 %v348, 0.35355338
    %v367 = vmul.f32 %v353, 0.35355338
    %v368 = vmul.f32 %v358, 0.35355338
    %v369 = vmul.f32 %v363, 0.35355338
    %v370 = vadd.f32 %v366, %v64
    %v371 = vadd.f32 %v367, %v65
    %v372 = vadd.f32 %v368, %v64
    %v373 = vadd.f32 %v369, %v65
    %v374 = vsel %vm172, %v370, -inf
    %375 = vmax.xlane.f32.xlu0 %v374
    %v376 = vpop.xlane.xlu0 %375
    %v377 = vsel %vm172, %v371, -inf
    %378 = vmax.xlane.f32.xlu0 %v377
    %v379 = vpop.xlane.xlu0 %378
    %v380 = vsel %vm172, %v372, -inf
    %381 = vmax.xlane.f32.xlu0 %v380
    %v382 = vpop.xlane.xlu0 %381
    %v383 = vsel %vm172, %v373, -inf
    %384 = vmax.xlane.f32.xlu0 %v383
    %v385 = vpop.xlane.xlu0 %384
    %v386 = vsub.f32 %v370, %v376
    %v387 = vsub.f32 %v371, %v379
    %v388 = vsub.f32 %v372, %v382
    %v389 = vsub.f32 %v373, %v385
    %v390 = vmul.f32 %v386, 1.442695
    %v391 = vpow.pop %v390
    %v392 = vmul.f32 %v387, 1.442695
    %v393 = vpow.pop %v392
    %v394 = vmul.f32 %v388, 1.442695
    %v395 = vpow.pop %v394
    %v396 = vmul.f32 %v389, 1.442695
    %v397 = vpow.pop %v396
    %v398 = vsel %vm172, %v391, 0.0
    %399 = vadd.xlane.f32.xlu0 %v398
    %v400 = vpop.xlane.xlu0 %399
    %v401 = vsel %vm172, %v393, 0.0
    %402 = vadd.xlane.f32.xlu0 %v401
    %v403 = vpop.xlane.xlu0 %402
    %v404 = vsel %vm172, %v395, 0.0
    %405 = vadd.xlane.f32.xlu0 %v404
    %v406 = vpop.xlane.xlu0 %405
    %v407 = vsel %vm172, %v397, 0.0
    %408 = vadd.xlane.f32.xlu0 %v407
    %v409 = vpop.xlane.xlu0 %408
    %v410 = vrcp.pop %v400
    %v411 = vrcp.pop %v403
    %v412 = vrcp.pop %v406
    %v413 = vrcp.pop %v409
    %v414 = vmul.f32 %v391, %v410
    %v415 = vmul.f32 %v393, %v411
    %v416 = vmul.f32 %v395, %v412
    %v417 = vmul.f32 %v397, %v413
    %418 = vrot.lane.b32.xlu0 %v150, 80
    %v419 = vpop.permute.xlu0 %418
    %420 = vrot.lane.b32.xlu0 %v153, 80
    %v421 = vpop.permute.xlu0 %420
    %v425 = vsel %vm172, %v414, 0
    %v428 = vsel %vm172, %v415, 0
    %v431 = vsel %vm172, %v416, 0
    %v434 = vsel %vm172, %v417, 0
    %436 = vmatprep.subr.mxu0 0.0
    %437 = vmatpush1.msra.mxu0 0.0
    %438 = vmatprep.subr.mxu0 0.0
    %439 = vmatpush1.msra.mxu0 0.0
    %440 = vmatprep.subr.mxu0 0.0
    %441 = vmatpush1.msra.mxu0 0.0
    %442 = vmatprep.subr.mxu0 0.0
    %443 = vmatpush1.msra.mxu0 0.0
    %444 = vmatprep.subr.mxu0 0.0
    %445 = vmatpush1.msra.mxu0 0.0
    %446 = vmatprep.subr.mxu0 0.0
    %447 = vmatpush1.msra.mxu0 0.0
    %448 = vmatprep.subr.mxu0 0.0
    %449 = vmatpush1.msra.mxu0 0.0
    %450 = vmatprep.subr.mxu0 0.0
    %451 = vmatpush1.msra.mxu0 0.0
    %452 = vmatprep.subr.mxu0 0.0
    %453 = vmatpush1.msra.mxu0 0.0
    %454 = vmatprep.subr.mxu0 0.0
    %455 = vmatpush1.msra.mxu0 0.0
    %456 = vmatprep.subr.mxu0 0.0
    %457 = vmatpush1.msra.mxu0 0.0
    %458 = vmatprep.subr.mxu0 0.0
    %459 = vmatpush1.msra.mxu0 0.0
    %460 = vmatprep.subr.mxu0 0.0
    %461 = vmatpush1.msra.mxu0 0.0
    %462 = vmatprep.subr.mxu0 0.0
    %463 = vmatpush1.msra.mxu0 0.0
    %464 = vmatprep.subr.mxu0 0.0
    %465 = vmatpush1.msra.mxu0 %v421
    %466 = vmatprep.subr.mxu0 0.0
    %467 = vmatpush1.msra.mxu0 %v419
    %468 = vmatprep.subr.mxu0 0.0
    %469 = vmatpush2.msra.mxu0 0.0
    %470 = vmatprep.subr.mxu0 0.0
    %471 = vmatpush2.msra.mxu0 0.0
    %472 = vmatprep.subr.mxu0 0.0
    %473 = vmatpush2.msra.mxu0 0.0
    %474 = vmatprep.subr.mxu0 0.0
    %475 = vmatpush2.msra.mxu0 0.0
    %476 = vmatprep.subr.mxu0 0.0
    %477 = vmatpush2.msra.mxu0 0.0
    %478 = vmatprep.subr.mxu0 0.0
    %479 = vmatpush2.msra.mxu0 0.0
    %480 = vmatprep.subr.mxu0 0.0
    %481 = vmatpush2.msra.mxu0 0.0
    %482 = vmatprep.subr.mxu0 0.0
    %483 = vmatpush2.msra.mxu0 0.0
    %484 = vmatprep.subr.mxu0 0.0
    %485 = vmatpush2.msra.mxu0 0.0
    %486 = vmatprep.subr.mxu0 0.0
    %487 = vmatpush2.msra.mxu0 0.0
    %488 = vmatprep.subr.mxu0 0.0
    %489 = vmatpush2.msra.mxu0 0.0
    %490 = vmatprep.subr.mxu0 0.0
    %491 = vmatpush2.msra.mxu0 0.0
    %492 = vmatprep.subr.mxu0 0.0
    %493 = vmatpush2.msra.mxu0 0.0
    %494 = vmatprep.subr.mxu0 0.0
    %495 = vmatpush2.msra.mxu0 0.0
    %496 = vmatprep.subr.mxu0 0.0
    %497 = vmatpush2.msra.mxu0 0.0
    %498 = vmatprep.subr.mxu0 0.0
    %499 = vmatpush2.msra.mxu0 0.0
    %500 = vmatprep.mubr.f32.mxu0 0.0
    %501 = vmatmul.mubr.f32.gmra.mxu0 %v425
    %v502 = vpop.f32.mrf.mxu0
    %v503 = vadd.f32 0.0, %v502
    %v504 = vpop.f32.mrf.mxu0
    %505 = vmatprep.mubr.f32.mxu0 0.0
    %506 = vmatmul.mubr.f32.gmra.mxu0 %v428
    %v507 = vpop.f32.mrf.mxu0
    %v508 = vadd.f32 0.0, %v507
    %v509 = vpop.f32.mrf.mxu0
    %510 = vmatprep.mubr.f32.mxu0 0.0
    %511 = vmatmul.mubr.f32.gmra.mxu0 %v431
    %v512 = vpop.f32.mrf.mxu0
    %v513 = vadd.f32 0.0, %v512
    %v514 = vpop.f32.mrf.mxu0
    %515 = vmatprep.mubr.f32.mxu0 0.0
    %516 = vmatmul.mubr.f32.gmra.mxu0 %v434
    %v517 = vpop.f32.mrf.mxu0
    %v518 = vadd.f32 0.0, %v517
    %v519 = vpop.f32.mrf.mxu0
    %520 = vdwg.mxu0
    %521 = vrot.lane.b32.xlu0 %v185, 120
    %v522 = vpop.permute.xlu0 %521
    %523 = vrot.lane.b32.xlu0 %v186, 120
    %v524 = vpop.permute.xlu0 %523
    %527 = vrot.lane.b32.xlu0 %v185, 108
    %v528 = vpop.permute.xlu0 %527
    %529 = vrot.lane.b32.xlu0 %v186, 108
    %v530 = vpop.permute.xlu0 %529
    %v533 = vsel %vm230, %v522, %v528
    %v534 = vsel %vm230, %v524, %v530
    %535 = vrot.lane.b32.xlu0 %v185, 104
    %v536 = vpop.permute.xlu0 %535
    %537 = vrot.lane.b32.xlu0 %v186, 104
    %v538 = vpop.permute.xlu0 %537
    %v541 = vsel %vm230, %v225, %v536
    %v542 = vsel %vm230, %v227, %v538
    %543 = vrot.lane.b32.xlu0 %v220, 88
    %v544 = vpop.permute.xlu0 %543
    %545 = vrot.lane.b32.xlu0 %v221, 88
    %v546 = vpop.permute.xlu0 %545
    %v549 = vsel %vm230, %v256, %v544
    %v550 = vsel %vm230, %v258, %v546
    %v552 = vsel %vm201, %v533, 0
    %v555 = vsel %vm201, %v534, 0
    %v558 = vsel %vm201, %v541, 0
    %v561 = vsel %vm201, %v542, 0
    %v564 = vsel %vm201, %v549, 0
    %v567 = vsel %vm201, %v550, 0
    %569 = vmatprep.subr.mxu0 0.0
    %570 = vmatpush1.xpose.msra.mxu0 0.0
    %571 = vmatprep.subr.mxu0 0.0
    %572 = vmatpush1.xpose.msra.mxu0 0.0
    %573 = vmatprep.subr.mxu0 0.0
    %574 = vmatpush1.xpose.msra.mxu0 0.0
    %575 = vmatprep.subr.mxu0 0.0
    %576 = vmatpush1.xpose.msra.mxu0 0.0
    %577 = vmatprep.subr.mxu0 0.0
    %578 = vmatpush1.xpose.msra.mxu0 0.0
    %579 = vmatprep.subr.mxu0 0.0
    %580 = vmatpush1.xpose.msra.mxu0 0.0
    %581 = vmatprep.subr.mxu0 0.0
    %582 = vmatpush1.xpose.msra.mxu0 0.0
    %583 = vmatprep.subr.mxu0 0.0
    %584 = vmatpush1.xpose.msra.mxu0 0.0
    %585 = vmatprep.subr.mxu0 0.0
    %586 = vmatpush1.xpose.msra.mxu0 0.0
    %587 = vmatprep.subr.mxu0 0.0
    %588 = vmatpush1.xpose.msra.mxu0 0.0
    %589 = vmatprep.subr.mxu0 0.0
    %590 = vmatpush1.xpose.msra.mxu0 0.0
    %591 = vmatprep.subr.mxu0 0.0
    %592 = vmatpush1.xpose.msra.mxu0 0.0
    %593 = vmatprep.subr.mxu0 0.0
    %594 = vmatpush1.xpose.msra.mxu0 0.0
    %595 = vmatprep.subr.mxu0 0.0
    %596 = vmatpush1.xpose.msra.mxu0 0.0
    %597 = vmatprep.subr.mxu0 0.0
    %598 = vmatpush1.xpose.msra.mxu0 %v567
    %599 = vmatprep.subr.mxu0 0.0
    %600 = vmatpush1.xpose.msra.mxu0 %v564
    %601 = vmatprep.subr.mxu0 0.0
    %602 = vmatpush2.xpose.msra.mxu0 0.0
    %603 = vmatprep.subr.mxu0 0.0
    %604 = vmatpush2.xpose.msra.mxu0 0.0
    %605 = vmatprep.subr.mxu0 0.0
    %606 = vmatpush2.xpose.msra.mxu0 0.0
    %607 = vmatprep.subr.mxu0 0.0
    %608 = vmatpush2.xpose.msra.mxu0 0.0
    %609 = vmatprep.subr.mxu0 0.0
    %610 = vmatpush2.xpose.msra.mxu0 0.0
    %611 = vmatprep.subr.mxu0 0.0
    %612 = vmatpush2.xpose.msra.mxu0 0.0
    %613 = vmatprep.subr.mxu0 0.0
    %614 = vmatpush2.xpose.msra.mxu0 0.0
    %615 = vmatprep.subr.mxu0 0.0
    %616 = vmatpush2.xpose.msra.mxu0 0.0
    %617 = vmatprep.subr.mxu0 0.0
    %618 = vmatpush2.xpose.msra.mxu0 0.0
    %619 = vmatprep.subr.mxu0 0.0
    %620 = vmatpush2.xpose.msra.mxu0 0.0
    %621 = vmatprep.subr.mxu0 0.0
    %622 = vmatpush2.xpose.msra.mxu0 0.0
    %623 = vmatprep.subr.mxu0 0.0
    %624 = vmatpush2.xpose.msra.mxu0 0.0
    %625 = vmatprep.subr.mxu0 0.0
    %626 = vmatpush2.xpose.msra.mxu0 0.0
    %627 = vmatprep.subr.mxu0 0.0
    %628 = vmatpush2.xpose.msra.mxu0 0.0
    %629 = vmatprep.subr.mxu0 0.0
    %630 = vmatpush2.xpose.msra.mxu0 0.0
    %631 = vmatprep.subr.mxu0 0.0
    %632 = vmatpush2.xpose.msra.mxu0 0.0
    %633 = vmatprep.mubr.f32.mxu0 0.0
    %634 = vmatmul.mubr.f32.gmra.mxu0 %v552
    %v635 = vpop.f32.mrf.mxu0
    %v636 = vadd.f32 0.0, %v635
    %v637 = vpop.f32.mrf.mxu0
    %638 = vmatprep.mubr.f32.mxu0 0.0
    %639 = vmatmul.mubr.f32.gmra.mxu0 %v555
    %v640 = vpop.f32.mrf.mxu0
    %v641 = vadd.f32 0.0, %v640
    %v642 = vpop.f32.mrf.mxu0
    %643 = vmatprep.mubr.f32.mxu0 0.0
    %644 = vmatmul.mubr.f32.gmra.mxu0 %v558
    %v645 = vpop.f32.mrf.mxu0
    %v646 = vadd.f32 0.0, %v645
    %v647 = vpop.f32.mrf.mxu0
    %648 = vmatprep.mubr.f32.mxu0 0.0
    %649 = vmatmul.mubr.f32.gmra.mxu0 %v561
    %v650 = vpop.f32.mrf.mxu0
    %v651 = vadd.f32 0.0, %v650
    %v652 = vpop.f32.mrf.mxu0
    %653 = vdwg.mxu0
    %v654 = vmul.f32 %v636, 0.35355338
    %v655 = vmul.f32 %v641, 0.35355338
    %v656 = vmul.f32 %v646, 0.35355338
    %v657 = vmul.f32 %v651, 0.35355338
    %v658 = vadd.f32 %v654, %v64
    %v659 = vadd.f32 %v655, %v65
    %v660 = vadd.f32 %v656, %v64
    %v661 = vadd.f32 %v657, %v65
    %v662 = vsel %vm172, %v658, -inf
    %663 = vmax.xlane.f32.xlu0 %v662
    %v664 = vpop.xlane.xlu0 %663
    %v665 = vsel %vm172, %v659, -inf
    %666 = vmax.xlane.f32.xlu0 %v665
    %v667 = vpop.xlane.xlu0 %666
    %v668 = vsel %vm172, %v660, -inf
    %669 = vmax.xlane.f32.xlu0 %v668
    %v670 = vpop.xlane.xlu0 %669
    %v671 = vsel %vm172, %v661, -inf
    %672 = vmax.xlane.f32.xlu0 %v671
    %v673 = vpop.xlane.xlu0 %672
    %v674 = vsub.f32 %v658, %v664
    %v675 = vsub.f32 %v659, %v667
    %v676 = vsub.f32 %v660, %v670
    %v677 = vsub.f32 %v661, %v673
    %v678 = vmul.f32 %v674, 1.442695
    %v679 = vpow.pop %v678
    %v680 = vmul.f32 %v675, 1.442695
    %v681 = vpow.pop %v680
    %v682 = vmul.f32 %v676, 1.442695
    %v683 = vpow.pop %v682
    %v684 = vmul.f32 %v677, 1.442695
    %v685 = vpow.pop %v684
    %v686 = vsel %vm172, %v679, 0.0
    %687 = vadd.xlane.f32.xlu0 %v686
    %v688 = vpop.xlane.xlu0 %687
    %v689 = vsel %vm172, %v681, 0.0
    %690 = vadd.xlane.f32.xlu0 %v689
    %v691 = vpop.xlane.xlu0 %690
    %v692 = vsel %vm172, %v683, 0.0
    %693 = vadd.xlane.f32.xlu0 %v692
    %v694 = vpop.xlane.xlu0 %693
    %v695 = vsel %vm172, %v685, 0.0
    %696 = vadd.xlane.f32.xlu0 %v695
    %v697 = vpop.xlane.xlu0 %696
    %v698 = vrcp.pop %v688
    %v699 = vrcp.pop %v691
    %v700 = vrcp.pop %v694
    %v701 = vrcp.pop %v697
    %v702 = vmul.f32 %v679, %v698
    %v703 = vmul.f32 %v681, %v699
    %v704 = vmul.f32 %v683, %v700
    %v705 = vmul.f32 %v685, %v701
    %706 = vrot.lane.b32.xlu0 %v150, 72
    %v707 = vpop.permute.xlu0 %706
    %708 = vrot.lane.b32.xlu0 %v153, 72
    %v709 = vpop.permute.xlu0 %708
    %v713 = vsel %vm172, %v702, 0
    %v716 = vsel %vm172, %v703, 0
    %v719 = vsel %vm172, %v704, 0
    %v722 = vsel %vm172, %v705, 0
    %724 = vmatprep.subr.mxu0 0.0
    %725 = vmatpush1.msra.mxu0 0.0
    %726 = vmatprep.subr.mxu0 0.0
    %727 = vmatpush1.msra.mxu0 0.0
    %728 = vmatprep.subr.mxu0 0.0
    %729 = vmatpush1.msra.mxu0 0.0
    %730 = vmatprep.subr.mxu0 0.0
    %731 = vmatpush1.msra.mxu0 0.0
    %732 = vmatprep.subr.mxu0 0.0
    %733 = vmatpush1.msra.mxu0 0.0
    %734 = vmatprep.subr.mxu0 0.0
    %735 = vmatpush1.msra.mxu0 0.0
    %736 = vmatprep.subr.mxu0 0.0
    %737 = vmatpush1.msra.mxu0 0.0
    %738 = vmatprep.subr.mxu0 0.0
    %739 = vmatpush1.msra.mxu0 0.0
    %740 = vmatprep.subr.mxu0 0.0
    %741 = vmatpush1.msra.mxu0 0.0
    %742 = vmatprep.subr.mxu0 0.0
    %743 = vmatpush1.msra.mxu0 0.0
    %744 = vmatprep.subr.mxu0 0.0
    %745 = vmatpush1.msra.mxu0 0.0
    %746 = vmatprep.subr.mxu0 0.0
    %747 = vmatpush1.msra.mxu0 0.0
    %748 = vmatprep.subr.mxu0 0.0
    %749 = vmatpush1.msra.mxu0 0.0
    %750 = vmatprep.subr.mxu0 0.0
    %751 = vmatpush1.msra.mxu0 0.0
    %752 = vmatprep.subr.mxu0 0.0
    %753 = vmatpush1.msra.mxu0 %v709
    %754 = vmatprep.subr.mxu0 0.0
    %755 = vmatpush1.msra.mxu0 %v707
    %756 = vmatprep.subr.mxu0 0.0
    %757 = vmatpush2.msra.mxu0 0.0
    %758 = vmatprep.subr.mxu0 0.0
    %759 = vmatpush2.msra.mxu0 0.0
    %760 = vmatprep.subr.mxu0 0.0
    %761 = vmatpush2.msra.mxu0 0.0
    %762 = vmatprep.subr.mxu0 0.0
    %763 = vmatpush2.msra.mxu0 0.0
    %764 = vmatprep.subr.mxu0 0.0
    %765 = vmatpush2.msra.mxu0 0.0
    %766 = vmatprep.subr.mxu0 0.0
    %767 = vmatpush2.msra.mxu0 0.0
    %768 = vmatprep.subr.mxu0 0.0
    %769 = vmatpush2.msra.mxu0 0.0
    %770 = vmatprep.subr.mxu0 0.0
    %771 = vmatpush2.msra.mxu0 0.0
    %772 = vmatprep.subr.mxu0 0.0
    %773 = vmatpush2.msra.mxu0 0.0
    %774 = vmatprep.subr.mxu0 0.0
    %775 = vmatpush2.msra.mxu0 0.0
    %776 = vmatprep.subr.mxu0 0.0
    %777 = vmatpush2.msra.mxu0 0.0
    %778 = vmatprep.subr.mxu0 0.0
    %779 = vmatpush2.msra.mxu0 0.0
    %780 = vmatprep.subr.mxu0 0.0
    %781 = vmatpush2.msra.mxu0 0.0
    %782 = vmatprep.subr.mxu0 0.0
    %783 = vmatpush2.msra.mxu0 0.0
    %784 = vmatprep.subr.mxu0 0.0
    %785 = vmatpush2.msra.mxu0 0.0
    %786 = vmatprep.subr.mxu0 0.0
    %787 = vmatpush2.msra.mxu0 0.0
    %788 = vmatprep.mubr.f32.mxu0 0.0
    %789 = vmatmul.mubr.f32.gmra.mxu0 %v713
    %v790 = vpop.f32.mrf.mxu0
    %v791 = vadd.f32 0.0, %v790
    %v792 = vpop.f32.mrf.mxu0
    %793 = vmatprep.mubr.f32.mxu0 0.0
    %794 = vmatmul.mubr.f32.gmra.mxu0 %v716
    %v795 = vpop.f32.mrf.mxu0
    %v796 = vadd.f32 0.0, %v795
    %v797 = vpop.f32.mrf.mxu0
    %798 = vmatprep.mubr.f32.mxu0 0.0
    %799 = vmatmul.mubr.f32.gmra.mxu0 %v719
    %v800 = vpop.f32.mrf.mxu0
    %v801 = vadd.f32 0.0, %v800
    %v802 = vpop.f32.mrf.mxu0
    %803 = vmatprep.mubr.f32.mxu0 0.0
    %804 = vmatmul.mubr.f32.gmra.mxu0 %v722
    %v805 = vpop.f32.mrf.mxu0
    %v806 = vadd.f32 0.0, %v805
    %v807 = vpop.f32.mrf.mxu0
    %808 = vdwg.mxu0
    %811 = vrot.lane.b32.xlu0 %v513, 8
    %v812 = vpop.permute.xlu0 %811
    %813 = vrot.lane.b32.xlu0 %v518, 8
    %v814 = vpop.permute.xlu0 %813
    %819 = vrot.lane.b32.xlu0 %v791, 16
    %v820 = vpop.permute.xlu0 %819
    %821 = vrot.lane.b32.xlu0 %v796, 16
    %v822 = vpop.permute.xlu0 %821
    %827 = vrot.lane.b32.xlu0 %v801, 24
    %v828 = vpop.permute.xlu0 %827
    %829 = vrot.lane.b32.xlu0 %v806, 24
    %v830 = vpop.permute.xlu0 %829
    %v833 = vsel %vm201, %v503, %v812
    %v834 = vsel %vm201, %v508, %v814
    %v835 = vsel %vm172, %v833, %v820
    %v836 = vsel %vm172, %v834, %v822
    %vm837 = vcmask 195584
    %v838 = vsel %vm837, %v835, %v828
    %v839 = vsel %vm837, %v836, %v830
    %v840 = vpack.c.bf16 %v839, %v838
    %841 = vrot.lane.b32.xlu0 %v108, 64
    %v842 = vpop.permute.xlu0 %841
    %843 = vrot.lane.b32.xlu0 %v109, 64
    %v844 = vpop.permute.xlu0 %843
    %v848 = vsel %vm75, %v840, 0
    %850 = vmatprep.subr.bf16.mxu0 0
    %851 = vmatpush1.bf16.msra.mxu0 0
    %852 = vmatprep.subr.bf16.mxu0 0
    %853 = vmatpush1.bf16.msra.mxu0 0
    %854 = vmatprep.subr.bf16.mxu0 0
    %855 = vmatpush1.bf16.msra.mxu0 0
    %856 = vmatprep.subr.bf16.mxu0 0
    %857 = vmatpush1.bf16.msra.mxu0 0
    %858 = vmatprep.subr.bf16.mxu0 0
    %859 = vmatpush1.bf16.msra.mxu0 0
    %860 = vmatprep.subr.bf16.mxu0 0
    %861 = vmatpush1.bf16.msra.mxu0 0
    %862 = vmatprep.subr.bf16.mxu0 0
    %863 = vmatpush1.bf16.msra.mxu0 %v844
    %864 = vmatprep.subr.bf16.mxu0 0
    %865 = vmatpush1.bf16.msra.mxu0 %v842
    %866 = vmatprep.subr.bf16.mxu0 0
    %867 = vmatpush2.bf16.msra.mxu0 0
    %868 = vmatprep.subr.bf16.mxu0 0
    %869 = vmatpush2.bf16.msra.mxu0 0
    %870 = vmatprep.subr.bf16.mxu0 0
    %871 = vmatpush2.bf16.msra.mxu0 0
    %872 = vmatprep.subr.bf16.mxu0 0
    %873 = vmatpush2.bf16.msra.mxu0 0
    %874 = vmatprep.subr.bf16.mxu0 0
    %875 = vmatpush2.bf16.msra.mxu0 0
    %876 = vmatprep.subr.bf16.mxu0 0
    %877 = vmatpush2.bf16.msra.mxu0 0
    %878 = vmatprep.subr.bf16.mxu0 0
    %879 = vmatpush2.bf16.msra.mxu0 0
    %880 = vmatprep.subr.bf16.mxu0 0
    %881 = vmatpush2.bf16.msra.mxu0 0
    %882 = vmatprep.mubr.bf16.mxu0 0
    %883 = vmatmul.mubr.bf16.gmra.mxu0 %v848
    %v884 = vpop.f32.mrf.mxu0
    %v885 = vadd.f32 0.0, %v884
    %v886 = vpop.f32.mrf.mxu0
    %v887 = vpop.f32.mrf.mxu0
    %v888 = vadd.f32 0.0, %v887
    %v889 = vpop.f32.mrf.mxu0
    %890 = vdwg.mxu0
    %v891 = vadd.f32 %v62, %v885
    %v892 = vadd.f32 %v63, %v888
    %v893 = vmul.f32 %v891, %v891
    %v894 = vmul.f32 %v892, %v892
    %v895 = vsel %vm75, %v893, 0.0
    %896 = vadd.xlane.f32.xlu0 %v895
    %v897 = vpop.xlane.xlu0 %896
    %v898 = vsel %vm75, %v894, 0.0
    %899 = vadd.xlane.f32.xlu0 %v898
    %v900 = vpop.xlane.xlu0 %899
    %v901 = vmul.f32 %v897, %v82
    %v902 = vmul.f32 %v900, %v82
    %v903 = vadd.f32 %v901, 1.1920929e-07
    %v904 = vadd.f32 %v902, 1.1920929e-07
    %v905 = vrsqrt.pop %v903
    %v906 = vrsqrt.pop %v904
    %v907 = vmul.f32 %v891, %v905
    %v908 = vmul.f32 %v892, %v906
    %909 = vrot.lane.b32.xlu0 %v95, 96
    %v910 = vpop.permute.xlu0 %909
    %v912 = vmul.f32 %v907, %v910
    %v913 = vmul.f32 %v908, %v910
    %v914 = vpack.c.bf16 %v913, %v912
    %v915 = vunpack.c.l.b16 %v68
    %v916 = vunpack.c.l.b16 %v69
    %v917 = vunpack.c.l.b16 %v70
    %v918 = vunpack.c.l.b16 %v71
    %v919 = vpack.c.b16 %v916, %v915
    %v920 = vpack.c.b16 %v918, %v917
    %v924 = vsel %vm75, %v914, 0
    %926 = vmatprep.subr.bf16.mxu0 0
    %927 = vmatpush1.bf16.msra.mxu0 0
    %928 = vmatprep.subr.bf16.mxu0 0
    %929 = vmatpush1.bf16.msra.mxu0 0
    %930 = vmatprep.subr.bf16.mxu0 0
    %931 = vmatpush1.bf16.msra.mxu0 0
    %932 = vmatprep.subr.bf16.mxu0 0
    %933 = vmatpush1.bf16.msra.mxu0 0
    %934 = vmatprep.subr.bf16.mxu0 0
    %935 = vmatpush1.bf16.msra.mxu0 0
    %936 = vmatprep.subr.bf16.mxu0 0
    %937 = vmatpush1.bf16.msra.mxu0 0
    %938 = vmatprep.subr.bf16.mxu0 0
    %939 = vmatpush1.bf16.msra.mxu0 %v920
    %940 = vmatprep.subr.bf16.mxu0 0
    %941 = vmatpush1.bf16.msra.mxu0 %v919
    %942 = vmatprep.subr.bf16.mxu0 0
    %943 = vmatpush2.bf16.msra.mxu0 0
    %944 = vmatprep.subr.bf16.mxu0 0
    %945 = vmatpush2.bf16.msra.mxu0 0
    %946 = vmatprep.subr.bf16.mxu0 0
    %947 = vmatpush2.bf16.msra.mxu0 0
    %948 = vmatprep.subr.bf16.mxu0 0
    %949 = vmatpush2.bf16.msra.mxu0 0
    %950 = vmatprep.subr.bf16.mxu0 0
    %951 = vmatpush2.bf16.msra.mxu0 0
    %952 = vmatprep.subr.bf16.mxu0 0
    %953 = vmatpush2.bf16.msra.mxu0 0
    %954 = vmatprep.subr.bf16.mxu0 0
    %955 = vmatpush2.bf16.msra.mxu0 0
    %956 = vmatprep.subr.bf16.mxu0 0
    %957 = vmatpush2.bf16.msra.mxu0 0
    %958 = vmatprep.mubr.bf16.mxu0 0
    %959 = vmatmul.mubr.bf16.gmra.mxu0 %v924
    %v960 = vpop.f32.mrf.mxu0
    %v961 = vadd.f32 0.0, %v960
    %v962 = vpop.f32.mrf.mxu0
    %v963 = vpop.f32.mrf.mxu0
    %v964 = vadd.f32 0.0, %v963
    %v965 = vpop.f32.mrf.mxu0
    %966 = vdwg.mxu0
    %v967 = vsub.f32 0.0, %v961
    %v968 = vsub.f32 0.0, %v964
    %v969 = vmul.f32 %v967, 1.442695
    %v970 = vpow.pop %v969
    %v971 = vmul.f32 %v968, 1.442695
    %v972 = vpow.pop %v971
    %v973 = vadd.f32 %v970, 1.0
    %v974 = vadd.f32 %v972, 1.0
    %v975 = vrcp.pop %v973
    %v976 = vmul.f32 1.0, %v975
    %v977 = vrcp.pop %v974
    %v978 = vmul.f32 1.0, %v977
    %v979 = vmul.f32 %v961, %v976
    %v980 = vmul.f32 %v964, %v978
    %983 = vrot.lane.b32.xlu0 %v961, 64
    %v984 = vpop.permute.xlu0 %983
    %985 = vrot.lane.b32.xlu0 %v964, 64
    %v986 = vpop.permute.xlu0 %985
    %v989 = vmul.f32 %v979, %v984
    %v990 = vmul.f32 %v980, %v986
    %v991 = vpack.c.bf16 %v990, %v989
    %v992 = vld [vmem:[%s4] sm:$0xf]
    %v993 = vld [vmem:[%s4 + $0x4] sm:$0xf]
    %v994 = vld [vmem:[%s4 + $0x8] sm:$0xf]
    %v995 = vld [vmem:[%s4 + $0xc] sm:$0xf]
    %v996 = vld [vmem:[%s4 + $0x10] sm:$0xf]
    %v997 = vld [vmem:[%s4 + $0x14] sm:$0xf]
    %v998 = vld [vmem:[%s4 + $0x18] sm:$0xf]
    %v999 = vld [vmem:[%s4 + $0x1c] sm:$0xf]
    %v1008 = vunpack.c.l.b16 %v992
    %v1009 = vunpack.c.l.b16 %v993
    %v1010 = vunpack.c.l.b16 %v994
    %v1011 = vunpack.c.l.b16 %v995
    %v1012 = vunpack.c.l.b16 %v996
    %v1013 = vunpack.c.l.b16 %v997
    %v1014 = vunpack.c.l.b16 %v998
    %v1015 = vunpack.c.l.b16 %v999
    %v1016 = vpack.c.b16 %v1009, %v1008
    %v1017 = vpack.c.b16 %v1011, %v1010
    %v1018 = vpack.c.b16 %v1013, %v1012
    %v1019 = vpack.c.b16 %v1015, %v1014
    %vm1024 = vcmask 523264
    %v1026 = vsel %vm1024, %v991, 0
    %1028 = vmatprep.subr.bf16.mxu0 0
    %1029 = vmatpush1.bf16.msra.mxu0 0
    %1030 = vmatprep.subr.bf16.mxu0 0
    %1031 = vmatpush1.bf16.msra.mxu0 0
    %1032 = vmatprep.subr.bf16.mxu0 0
    %1033 = vmatpush1.bf16.msra.mxu0 0
    %1034 = vmatprep.subr.bf16.mxu0 0
    %1035 = vmatpush1.bf16.msra.mxu0 0
    %1036 = vmatprep.subr.bf16.mxu0 0
    %1037 = vmatpush1.bf16.msra.mxu0 %v1019
    %1038 = vmatprep.subr.bf16.mxu0 0
    %1039 = vmatpush1.bf16.msra.mxu0 %v1018
    %1040 = vmatprep.subr.bf16.mxu0 0
    %1041 = vmatpush1.bf16.msra.mxu0 %v1017
    %1042 = vmatprep.subr.bf16.mxu0 0
    %1043 = vmatpush1.bf16.msra.mxu0 %v1016
    %1044 = vmatprep.subr.bf16.mxu0 0
    %1045 = vmatpush2.bf16.msra.mxu0 0
    %1046 = vmatprep.subr.bf16.mxu0 0
    %1047 = vmatpush2.bf16.msra.mxu0 0
    %1048 = vmatprep.subr.bf16.mxu0 0
    %1049 = vmatpush2.bf16.msra.mxu0 0
    %1050 = vmatprep.subr.bf16.mxu0 0
    %1051 = vmatpush2.bf16.msra.mxu0 0
    %1052 = vmatprep.subr.bf16.mxu0 0
    %1053 = vmatpush2.bf16.msra.mxu0 0
    %1054 = vmatprep.subr.bf16.mxu0 0
    %1055 = vmatpush2.bf16.msra.mxu0 0
    %1056 = vmatprep.subr.bf16.mxu0 0
    %1057 = vmatpush2.bf16.msra.mxu0 0
    %1058 = vmatprep.subr.bf16.mxu0 0
    %1059 = vmatpush2.bf16.msra.mxu0 0
    %1060 = vmatprep.mubr.bf16.mxu0 0
    %1061 = vmatmul.mubr.bf16.gmra.mxu0 %v1026
    %v1062 = vpop.f32.mrf.mxu0
    %v1063 = vadd.f32 0.0, %v1062
    %v1064 = vpop.f32.mrf.mxu0
    %v1065 = vpop.f32.mrf.mxu0
    %v1066 = vadd.f32 0.0, %v1065
    %v1067 = vpop.f32.mrf.mxu0
    %1068 = vdwg.mxu0
    %v1069 = vadd.f32 %v891, %v1063
    %v1070 = vadd.f32 %v892, %v1066
    %s1071 = scalar_lea.vmem %s3, 32
    %v1072 = vld [vmem:[%s1071] sm:$0xff]
    %v1073 = vld [vmem:[%s1071 + $0x8] sm:$0xff]
    %v1074 = vld [vmem:[%s1071 + $0x10] sm:$0xff]
    %v1075 = vld [vmem:[%s1071 + $0x18] sm:$0xff]
    %s1076 = scalar_lea.vmem %s5, 1
    %v1077 = vld [vmem:[%s1076] sm:$0x1]
    %v1078 = vmul.f32 %v1069, %v1069
    %v1079 = vmul.f32 %v1070, %v1070
    %v1080 = vsel %vm75, %v1078, 0.0
    %1081 = vadd.xlane.f32.xlu0 %v1080
    %v1082 = vpop.xlane.xlu0 %1081
    %v1083 = vsel %vm75, %v1079, 0.0
    %1084 = vadd.xlane.f32.xlu0 %v1083
    %v1085 = vpop.xlane.xlu0 %1084
    %v1086 = vmul.f32 %v1082, %v82
    %v1087 = vmul.f32 %v1085, %v82
    %v1088 = vadd.f32 %v1086, 1.1920929e-07
    %v1089 = vadd.f32 %v1087, 1.1920929e-07
    %v1090 = vrsqrt.pop %v1088
    %v1091 = vrsqrt.pop %v1089
    %v1092 = vmul.f32 %v1069, %v1090
    %v1093 = vmul.f32 %v1070, %v1091
    %v1095 = vlaneseq
    %v1096 = vshrl.u32 %v1095, 7
    %v1097 = vsub.s32 0, %v1096
    %v1098 = vrot.slane %v1077, %v1097
    %v1100 = vmul.f32 %v1092, %v1098
    %v1101 = vmul.f32 %v1093, %v1098
    %v1102 = vpack.c.bf16 %v1101, %v1100
    %v1107 = vunpack.c.h.b16 %v1072
    %v1108 = vunpack.c.h.b16 %v1073
    %v1109 = vunpack.c.h.b16 %v1074
    %v1110 = vunpack.c.h.b16 %v1075
    %v1111 = vpack.c.b16 %v1108, %v1107
    %v1112 = vpack.c.b16 %v1110, %v1109
    %v1116 = vsel %vm75, %v1102, 0
    %1118 = vmatprep.subr.bf16.mxu0 0
    %1119 = vmatpush1.bf16.msra.mxu0 0
    %1120 = vmatprep.subr.bf16.mxu0 0
    %1121 = vmatpush1.bf16.msra.mxu0 0
    %1122 = vmatprep.subr.bf16.mxu0 0
    %1123 = vmatpush1.bf16.msra.mxu0 0
    %1124 = vmatprep.subr.bf16.mxu0 0
    %1125 = vmatpush1.bf16.msra.mxu0 0
    %1126 = vmatprep.subr.bf16.mxu0 0
    %1127 = vmatpush1.bf16.msra.mxu0 0
    %1128 = vmatprep.subr.bf16.mxu0 0
    %1129 = vmatpush1.bf16.msra.mxu0 0
    %1130 = vmatprep.subr.bf16.mxu0 0
    %1131 = vmatpush1.bf16.msra.mxu0 %v1112
    %1132 = vmatprep.subr.bf16.mxu0 0
    %1133 = vmatpush1.bf16.msra.mxu0 %v1111
    %1134 = vmatprep.subr.bf16.mxu0 0
    %1135 = vmatpush2.bf16.msra.mxu0 0
    %1136 = vmatprep.subr.bf16.mxu0 0
    %1137 = vmatpush2.bf16.msra.mxu0 0
    %1138 = vmatprep.subr.bf16.mxu0 0
    %1139 = vmatpush2.bf16.msra.mxu0 0
    %1140 = vmatprep.subr.bf16.mxu0 0
    %1141 = vmatpush2.bf16.msra.mxu0 0
    %1142 = vmatprep.subr.bf16.mxu0 0
    %1143 = vmatpush2.bf16.msra.mxu0 0
    %1144 = vmatprep.subr.bf16.mxu0 0
    %1145 = vmatpush2.bf16.msra.mxu0 0
    %1146 = vmatprep.subr.bf16.mxu0 0
    %1147 = vmatpush2.bf16.msra.mxu0 0
    %1148 = vmatprep.subr.bf16.mxu0 0
    %1149 = vmatpush2.bf16.msra.mxu0 0
    %1150 = vmatprep.mubr.bf16.mxu0 0
    %1151 = vmatmul.mubr.bf16.gmra.mxu0 %v1116
    %v1152 = vpop.f32.mrf.mxu0
    %v1153 = vadd.f32 0.0, %v1152
    %v1154 = vpop.f32.mrf.mxu0
    %v1155 = vpop.f32.mrf.mxu0
    %v1156 = vadd.f32 0.0, %v1155
    %v1157 = vpop.f32.mrf.mxu0
    %1158 = vdwg.mxu0
    %v1159 = vmul.f32 %v1153, %v66
    %v1160 = vmul.f32 %v1156, %v67
    %1163 = vrot.lane.b32.xlu0 %v1153, 112
    %v1164 = vpop.permute.xlu0 %1163
    %1165 = vrot.lane.b32.xlu0 %v1156, 112
    %v1166 = vpop.permute.xlu0 %1165
    %1169 = vrot.lane.b32.xlu0 %v1153, 16
    %v1170 = vpop.permute.xlu0 %1169
    %1171 = vrot.lane.b32.xlu0 %v1156, 16
    %v1172 = vpop.permute.xlu0 %1171
    %v1175 = vsel %vm172, %v1164, %v1170
    %v1176 = vsel %vm172, %v1166, %v1172
    %v1177 = vmul.f32 %v1175, %v178
    %v1178 = vmul.f32 %v1176, %v180
    %v1179 = vadd.f32 %v1159, %v1177
    %v1180 = vadd.f32 %v1160, %v1178
    %v1181 = vmul.f32 %v1153, %v178
    %v1182 = vmul.f32 %v1156, %v180
    %1183 = vrot.lane.b32.xlu0 %v1153, 88
    %v1184 = vpop.permute.xlu0 %1183
    %1185 = vrot.lane.b32.xlu0 %v1156, 88
    %v1186 = vpop.permute.xlu0 %1185
    %1189 = vrot.lane.b32.xlu0 %v1153, 104
    %v1190 = vpop.permute.xlu0 %1189
    %1191 = vrot.lane.b32.xlu0 %v1156, 104
    %v1192 = vpop.permute.xlu0 %1191
    %v1195 = vsel %vm201, %v1184, %v1190
    %v1196 = vsel %vm201, %v1186, %v1192
    %v1197 = vmul.f32 %v1195, %v205
    %v1198 = vmul.f32 %v1196, %v207
    %1201 = vrot.lane.b32.xlu0 %v1197, 32
    %v1202 = vpop.permute.xlu0 %1201
    %1203 = vrot.lane.b32.xlu0 %v1198, 32
    %v1204 = vpop.permute.xlu0 %1203
    %v1207 = vadd.f32 %v1181, %v1202
    %v1208 = vadd.f32 %v1182, %v1204
    %1211 = vrot.lane.b32.xlu0 %v1179, 116
    %v1212 = vpop.permute.xlu0 %1211
    %1213 = vrot.lane.b32.xlu0 %v1180, 116
    %v1214 = vpop.permute.xlu0 %1213
    %v1217 = vsel %vm230, %v1179, %v1212
    %v1218 = vsel %vm230, %v1180, %v1214
    %1219 = vrot.lane.b32.xlu0 %v1179, 124
    %v1220 = vpop.permute.xlu0 %1219
    %1221 = vrot.lane.b32.xlu0 %v1180, 124
    %v1222 = vpop.permute.xlu0 %1221
    %1225 = vrot.lane.b32.xlu0 %v1179, 112
    %v1226 = vpop.permute.xlu0 %1225
    %1227 = vrot.lane.b32.xlu0 %v1180, 112
    %v1228 = vpop.permute.xlu0 %1227
    %v1231 = vsel %vm230, %v1220, %v1226
    %v1232 = vsel %vm230, %v1222, %v1228
    %1235 = vrot.lane.b32.xlu0 %v1207, 96
    %v1236 = vpop.permute.xlu0 %1235
    %1237 = vrot.lane.b32.xlu0 %v1208, 96
    %v1238 = vpop.permute.xlu0 %1237
    %1241 = vrot.lane.b32.xlu0 %v1207, 92
    %v1242 = vpop.permute.xlu0 %1241
    %1243 = vrot.lane.b32.xlu0 %v1208, 92
    %v1244 = vpop.permute.xlu0 %1243
    %v1247 = vsel %vm230, %v1236, %v1242
    %v1248 = vsel %vm230, %v1238, %v1244
    %v1250 = vsel %vm201, %v1217, 0
    %v1253 = vsel %vm201, %v1218, 0
    %v1256 = vsel %vm201, %v1231, 0
    %v1259 = vsel %vm201, %v1232, 0
    %v1262 = vsel %vm201, %v1247, 0
    %v1265 = vsel %vm201, %v1248, 0
    %1267 = vmatprep.subr.mxu0 0.0
    %1268 = vmatpush1.xpose.msra.mxu0 0.0
    %1269 = vmatprep.subr.mxu0 0.0
    %1270 = vmatpush1.xpose.msra.mxu0 0.0
    %1271 = vmatprep.subr.mxu0 0.0
    %1272 = vmatpush1.xpose.msra.mxu0 0.0
    %1273 = vmatprep.subr.mxu0 0.0
    %1274 = vmatpush1.xpose.msra.mxu0 0.0
    %1275 = vmatprep.subr.mxu0 0.0
    %1276 = vmatpush1.xpose.msra.mxu0 0.0
    %1277 = vmatprep.subr.mxu0 0.0
    %1278 = vmatpush1.xpose.msra.mxu0 0.0
    %1279 = vmatprep.subr.mxu0 0.0
    %1280 = vmatpush1.xpose.msra.mxu0 0.0
    %1281 = vmatprep.subr.mxu0 0.0
    %1282 = vmatpush1.xpose.msra.mxu0 0.0
    %1283 = vmatprep.subr.mxu0 0.0
    %1284 = vmatpush1.xpose.msra.mxu0 0.0
    %1285 = vmatprep.subr.mxu0 0.0
    %1286 = vmatpush1.xpose.msra.mxu0 0.0
    %1287 = vmatprep.subr.mxu0 0.0
    %1288 = vmatpush1.xpose.msra.mxu0 0.0
    %1289 = vmatprep.subr.mxu0 0.0
    %1290 = vmatpush1.xpose.msra.mxu0 0.0
    %1291 = vmatprep.subr.mxu0 0.0
    %1292 = vmatpush1.xpose.msra.mxu0 0.0
    %1293 = vmatprep.subr.mxu0 0.0
    %1294 = vmatpush1.xpose.msra.mxu0 0.0
    %1295 = vmatprep.subr.mxu0 0.0
    %1296 = vmatpush1.xpose.msra.mxu0 %v1265
    %1297 = vmatprep.subr.mxu0 0.0
    %1298 = vmatpush1.xpose.msra.mxu0 %v1262
    %1299 = vmatprep.subr.mxu0 0.0
    %1300 = vmatpush2.xpose.msra.mxu0 0.0
    %1301 = vmatprep.subr.mxu0 0.0
    %1302 = vmatpush2.xpose.msra.mxu0 0.0
    %1303 = vmatprep.subr.mxu0 0.0
    %1304 = vmatpush2.xpose.msra.mxu0 0.0
    %1305 = vmatprep.subr.mxu0 0.0
    %1306 = vmatpush2.xpose.msra.mxu0 0.0
    %1307 = vmatprep.subr.mxu0 0.0
    %1308 = vmatpush2.xpose.msra.mxu0 0.0
    %1309 = vmatprep.subr.mxu0 0.0
    %1310 = vmatpush2.xpose.msra.mxu0 0.0
    %1311 = vmatprep.subr.mxu0 0.0
    %1312 = vmatpush2.xpose.msra.mxu0 0.0
    %1313 = vmatprep.subr.mxu0 0.0
    %1314 = vmatpush2.xpose.msra.mxu0 0.0
    %1315 = vmatprep.subr.mxu0 0.0
    %1316 = vmatpush2.xpose.msra.mxu0 0.0
    %1317 = vmatprep.subr.mxu0 0.0
    %1318 = vmatpush2.xpose.msra.mxu0 0.0
    %1319 = vmatprep.subr.mxu0 0.0
    %1320 = vmatpush2.xpose.msra.mxu0 0.0
    %1321 = vmatprep.subr.mxu0 0.0
    %1322 = vmatpush2.xpose.msra.mxu0 0.0
    %1323 = vmatprep.subr.mxu0 0.0
    %1324 = vmatpush2.xpose.msra.mxu0 0.0
    %1325 = vmatprep.subr.mxu0 0.0
    %1326 = vmatpush2.xpose.msra.mxu0 0.0
    %1327 = vmatprep.subr.mxu0 0.0
    %1328 = vmatpush2.xpose.msra.mxu0 0.0
    %1329 = vmatprep.subr.mxu0 0.0
    %1330 = vmatpush2.xpose.msra.mxu0 0.0
    %1331 = vmatprep.mubr.f32.mxu0 0.0
    %1332 = vmatmul.mubr.f32.gmra.mxu0 %v1250
    %v1333 = vpop.f32.mrf.mxu0
    %v1334 = vadd.f32 0.0, %v1333
    %v1335 = vpop.f32.mrf.mxu0
    %1336 = vmatprep.mubr.f32.mxu0 0.0
    %1337 = vmatmul.mubr.f32.gmra.mxu0 %v1253
    %v1338 = vpop.f32.mrf.mxu0
    %v1339 = vadd.f32 0.0, %v1338
    %v1340 = vpop.f32.mrf.mxu0
    %1341 = vmatprep.mubr.f32.mxu0 0.0
    %1342 = vmatmul.mubr.f32.gmra.mxu0 %v1256
    %v1343 = vpop.f32.mrf.mxu0
    %v1344 = vadd.f32 0.0, %v1343
    %v1345 = vpop.f32.mrf.mxu0
    %1346 = vmatprep.mubr.f32.mxu0 0.0
    %1347 = vmatmul.mubr.f32.gmra.mxu0 %v1259
    %v1348 = vpop.f32.mrf.mxu0
    %v1349 = vadd.f32 0.0, %v1348
    %v1350 = vpop.f32.mrf.mxu0
    %1351 = vdwg.mxu0
    %v1352 = vmul.f32 %v1334, 0.35355338
    %v1353 = vmul.f32 %v1339, 0.35355338
    %v1354 = vmul.f32 %v1344, 0.35355338
    %v1355 = vmul.f32 %v1349, 0.35355338
    %v1356 = vadd.f32 %v1352, %v64
    %v1357 = vadd.f32 %v1353, %v65
    %v1358 = vadd.f32 %v1354, %v64
    %v1359 = vadd.f32 %v1355, %v65
    %v1360 = vsel %vm172, %v1356, -inf
    %1361 = vmax.xlane.f32.xlu0 %v1360
    %v1362 = vpop.xlane.xlu0 %1361
    %v1363 = vsel %vm172, %v1357, -inf
    %1364 = vmax.xlane.f32.xlu0 %v1363
    %v1365 = vpop.xlane.xlu0 %1364
    %v1366 = vsel %vm172, %v1358, -inf
    %1367 = vmax.xlane.f32.xlu0 %v1366
    %v1368 = vpop.xlane.xlu0 %1367
    %v1369 = vsel %vm172, %v1359, -inf
    %1370 = vmax.xlane.f32.xlu0 %v1369
    %v1371 = vpop.xlane.xlu0 %1370
    %v1372 = vsub.f32 %v1356, %v1362
    %v1373 = vsub.f32 %v1357, %v1365
    %v1374 = vsub.f32 %v1358, %v1368
    %v1375 = vsub.f32 %v1359, %v1371
    %v1376 = vmul.f32 %v1372, 1.442695
    %v1377 = vpow.pop %v1376
    %v1378 = vmul.f32 %v1373, 1.442695
    %v1379 = vpow.pop %v1378
    %v1380 = vmul.f32 %v1374, 1.442695
    %v1381 = vpow.pop %v1380
    %v1382 = vmul.f32 %v1375, 1.442695
    %v1383 = vpow.pop %v1382
    %v1384 = vsel %vm172, %v1377, 0.0
    %1385 = vadd.xlane.f32.xlu0 %v1384
    %v1386 = vpop.xlane.xlu0 %1385
    %v1387 = vsel %vm172, %v1379, 0.0
    %1388 = vadd.xlane.f32.xlu0 %v1387
    %v1389 = vpop.xlane.xlu0 %1388
    %v1390 = vsel %vm172, %v1381, 0.0
    %1391 = vadd.xlane.f32.xlu0 %v1390
    %v1392 = vpop.xlane.xlu0 %1391
    %v1393 = vsel %vm172, %v1383, 0.0
    %1394 = vadd.xlane.f32.xlu0 %v1393
    %v1395 = vpop.xlane.xlu0 %1394
    %v1396 = vrcp.pop %v1386
    %v1397 = vrcp.pop %v1389
    %v1398 = vrcp.pop %v1392
    %v1399 = vrcp.pop %v1395
    %v1400 = vmul.f32 %v1377, %v1396
    %v1401 = vmul.f32 %v1379, %v1397
    %v1402 = vmul.f32 %v1381, %v1398
    %v1403 = vmul.f32 %v1383, %v1399
    %1404 = vrot.lane.b32.xlu0 %v1153, 80
    %v1405 = vpop.permute.xlu0 %1404
    %1406 = vrot.lane.b32.xlu0 %v1156, 80
    %v1407 = vpop.permute.xlu0 %1406
    %v1411 = vsel %vm172, %v1400, 0
    %v1414 = vsel %vm172, %v1401, 0
    %v1417 = vsel %vm172, %v1402, 0
    %v1420 = vsel %vm172, %v1403, 0
    %1422 = vmatprep.subr.mxu0 0.0
    %1423 = vmatpush1.msra.mxu0 0.0
    %1424 = vmatprep.subr.mxu0 0.0
    %1425 = vmatpush1.msra.mxu0 0.0
    %1426 = vmatprep.subr.mxu0 0.0
    %1427 = vmatpush1.msra.mxu0 0.0
    %1428 = vmatprep.subr.mxu0 0.0
    %1429 = vmatpush1.msra.mxu0 0.0
    %1430 = vmatprep.subr.mxu0 0.0
    %1431 = vmatpush1.msra.mxu0 0.0
    %1432 = vmatprep.subr.mxu0 0.0
    %1433 = vmatpush1.msra.mxu0 0.0
    %1434 = vmatprep.subr.mxu0 0.0
    %1435 = vmatpush1.msra.mxu0 0.0
    %1436 = vmatprep.subr.mxu0 0.0
    %1437 = vmatpush1.msra.mxu0 0.0
    %1438 = vmatprep.subr.mxu0 0.0
    %1439 = vmatpush1.msra.mxu0 0.0
    %1440 = vmatprep.subr.mxu0 0.0
    %1441 = vmatpush1.msra.mxu0 0.0
    %1442 = vmatprep.subr.mxu0 0.0
    %1443 = vmatpush1.msra.mxu0 0.0
    %1444 = vmatprep.subr.mxu0 0.0
    %1445 = vmatpush1.msra.mxu0 0.0
    %1446 = vmatprep.subr.mxu0 0.0
    %1447 = vmatpush1.msra.mxu0 0.0
    %1448 = vmatprep.subr.mxu0 0.0
    %1449 = vmatpush1.msra.mxu0 0.0
    %1450 = vmatprep.subr.mxu0 0.0
    %1451 = vmatpush1.msra.mxu0 %v1407
    %1452 = vmatprep.subr.mxu0 0.0
    %1453 = vmatpush1.msra.mxu0 %v1405
    %1454 = vmatprep.subr.mxu0 0.0
    %1455 = vmatpush2.msra.mxu0 0.0
    %1456 = vmatprep.subr.mxu0 0.0
    %1457 = vmatpush2.msra.mxu0 0.0
    %1458 = vmatprep.subr.mxu0 0.0
    %1459 = vmatpush2.msra.mxu0 0.0
    %1460 = vmatprep.subr.mxu0 0.0
    %1461 = vmatpush2.msra.mxu0 0.0
    %1462 = vmatprep.subr.mxu0 0.0
    %1463 = vmatpush2.msra.mxu0 0.0
    %1464 = vmatprep.subr.mxu0 0.0
    %1465 = vmatpush2.msra.mxu0 0.0
    %1466 = vmatprep.subr.mxu0 0.0
    %1467 = vmatpush2.msra.mxu0 0.0
    %1468 = vmatprep.subr.mxu0 0.0
    %1469 = vmatpush2.msra.mxu0 0.0
    %1470 = vmatprep.subr.mxu0 0.0
    %1471 = vmatpush2.msra.mxu0 0.0
    %1472 = vmatprep.subr.mxu0 0.0
    %1473 = vmatpush2.msra.mxu0 0.0
    %1474 = vmatprep.subr.mxu0 0.0
    %1475 = vmatpush2.msra.mxu0 0.0
    %1476 = vmatprep.subr.mxu0 0.0
    %1477 = vmatpush2.msra.mxu0 0.0
    %1478 = vmatprep.subr.mxu0 0.0
    %1479 = vmatpush2.msra.mxu0 0.0
    %1480 = vmatprep.subr.mxu0 0.0
    %1481 = vmatpush2.msra.mxu0 0.0
    %1482 = vmatprep.subr.mxu0 0.0
    %1483 = vmatpush2.msra.mxu0 0.0
    %1484 = vmatprep.subr.mxu0 0.0
    %1485 = vmatpush2.msra.mxu0 0.0
    %1486 = vmatprep.mubr.f32.mxu0 0.0
    %1487 = vmatmul.mubr.f32.gmra.mxu0 %v1411
    %v1488 = vpop.f32.mrf.mxu0
    %v1489 = vadd.f32 0.0, %v1488
    %v1490 = vpop.f32.mrf.mxu0
    %1491 = vmatprep.mubr.f32.mxu0 0.0
    %1492 = vmatmul.mubr.f32.gmra.mxu0 %v1414
    %v1493 = vpop.f32.mrf.mxu0
    %v1494 = vadd.f32 0.0, %v1493
    %v1495 = vpop.f32.mrf.mxu0
    %1496 = vmatprep.mubr.f32.mxu0 0.0
    %1497 = vmatmul.mubr.f32.gmra.mxu0 %v1417
    %v1498 = vpop.f32.mrf.mxu0
    %v1499 = vadd.f32 0.0, %v1498
    %v1500 = vpop.f32.mrf.mxu0
    %1501 = vmatprep.mubr.f32.mxu0 0.0
    %1502 = vmatmul.mubr.f32.gmra.mxu0 %v1420
    %v1503 = vpop.f32.mrf.mxu0
    %v1504 = vadd.f32 0.0, %v1503
    %v1505 = vpop.f32.mrf.mxu0
    %1506 = vdwg.mxu0
    %1507 = vrot.lane.b32.xlu0 %v1179, 120
    %v1508 = vpop.permute.xlu0 %1507
    %1509 = vrot.lane.b32.xlu0 %v1180, 120
    %v1510 = vpop.permute.xlu0 %1509
    %1513 = vrot.lane.b32.xlu0 %v1179, 108
    %v1514 = vpop.permute.xlu0 %1513
    %1515 = vrot.lane.b32.xlu0 %v1180, 108
    %v1516 = vpop.permute.xlu0 %1515
    %v1519 = vsel %vm230, %v1508, %v1514
    %v1520 = vsel %vm230, %v1510, %v1516
    %1521 = vrot.lane.b32.xlu0 %v1179, 104
    %v1522 = vpop.permute.xlu0 %1521
    %1523 = vrot.lane.b32.xlu0 %v1180, 104
    %v1524 = vpop.permute.xlu0 %1523
    %v1527 = vsel %vm230, %v1212, %v1522
    %v1528 = vsel %vm230, %v1214, %v1524
    %1529 = vrot.lane.b32.xlu0 %v1207, 88
    %v1530 = vpop.permute.xlu0 %1529
    %1531 = vrot.lane.b32.xlu0 %v1208, 88
    %v1532 = vpop.permute.xlu0 %1531
    %v1535 = vsel %vm230, %v1242, %v1530
    %v1536 = vsel %vm230, %v1244, %v1532
    %v1538 = vsel %vm201, %v1519, 0
    %v1541 = vsel %vm201, %v1520, 0
    %v1544 = vsel %vm201, %v1527, 0
    %v1547 = vsel %vm201, %v1528, 0
    %v1550 = vsel %vm201, %v1535, 0
    %v1553 = vsel %vm201, %v1536, 0
    %1555 = vmatprep.subr.mxu0 0.0
    %1556 = vmatpush1.xpose.msra.mxu0 0.0
    %1557 = vmatprep.subr.mxu0 0.0
    %1558 = vmatpush1.xpose.msra.mxu0 0.0
    %1559 = vmatprep.subr.mxu0 0.0
    %1560 = vmatpush1.xpose.msra.mxu0 0.0
    %1561 = vmatprep.subr.mxu0 0.0
    %1562 = vmatpush1.xpose.msra.mxu0 0.0
    %1563 = vmatprep.subr.mxu0 0.0
    %1564 = vmatpush1.xpose.msra.mxu0 0.0
    %1565 = vmatprep.subr.mxu0 0.0
    %1566 = vmatpush1.xpose.msra.mxu0 0.0
    %1567 = vmatprep.subr.mxu0 0.0
    %1568 = vmatpush1.xpose.msra.mxu0 0.0
    %1569 = vmatprep.subr.mxu0 0.0
    %1570 = vmatpush1.xpose.msra.mxu0 0.0
    %1571 = vmatprep.subr.mxu0 0.0
    %1572 = vmatpush1.xpose.msra.mxu0 0.0
    %1573 = vmatprep.subr.mxu0 0.0
    %1574 = vmatpush1.xpose.msra.mxu0 0.0
    %1575 = vmatprep.subr.mxu0 0.0
    %1576 = vmatpush1.xpose.msra.mxu0 0.0
    %1577 = vmatprep.subr.mxu0 0.0
    %1578 = vmatpush1.xpose.msra.mxu0 0.0
    %1579 = vmatprep.subr.mxu0 0.0
    %1580 = vmatpush1.xpose.msra.mxu0 0.0
    %1581 = vmatprep.subr.mxu0 0.0
    %1582 = vmatpush1.xpose.msra.mxu0 0.0
    %1583 = vmatprep.subr.mxu0 0.0
    %1584 = vmatpush1.xpose.msra.mxu0 %v1553
    %1585 = vmatprep.subr.mxu0 0.0
    %1586 = vmatpush1.xpose.msra.mxu0 %v1550
    %1587 = vmatprep.subr.mxu0 0.0
    %1588 = vmatpush2.xpose.msra.mxu0 0.0
    %1589 = vmatprep.subr.mxu0 0.0
    %1590 = vmatpush2.xpose.msra.mxu0 0.0
    %1591 = vmatprep.subr.mxu0 0.0
    %1592 = vmatpush2.xpose.msra.mxu0 0.0
    %1593 = vmatprep.subr.mxu0 0.0
    %1594 = vmatpush2.xpose.msra.mxu0 0.0
    %1595 = vmatprep.subr.mxu0 0.0
    %1596 = vmatpush2.xpose.msra.mxu0 0.0
    %1597 = vmatprep.subr.mxu0 0.0
    %1598 = vmatpush2.xpose.msra.mxu0 0.0
    %1599 = vmatprep.subr.mxu0 0.0
    %1600 = vmatpush2.xpose.msra.mxu0 0.0
    %1601 = vmatprep.subr.mxu0 0.0
    %1602 = vmatpush2.xpose.msra.mxu0 0.0
    %1603 = vmatprep.subr.mxu0 0.0
    %1604 = vmatpush2.xpose.msra.mxu0 0.0
    %1605 = vmatprep.subr.mxu0 0.0
    %1606 = vmatpush2.xpose.msra.mxu0 0.0
    %1607 = vmatprep.subr.mxu0 0.0
    %1608 = vmatpush2.xpose.msra.mxu0 0.0
    %1609 = vmatprep.subr.mxu0 0.0
    %1610 = vmatpush2.xpose.msra.mxu0 0.0
    %1611 = vmatprep.subr.mxu0 0.0
    %1612 = vmatpush2.xpose.msra.mxu0 0.0
    %1613 = vmatprep.subr.mxu0 0.0
    %1614 = vmatpush2.xpose.msra.mxu0 0.0
    %1615 = vmatprep.subr.mxu0 0.0
    %1616 = vmatpush2.xpose.msra.mxu0 0.0
    %1617 = vmatprep.subr.mxu0 0.0
    %1618 = vmatpush2.xpose.msra.mxu0 0.0
    %1619 = vmatprep.mubr.f32.mxu0 0.0
    %1620 = vmatmul.mubr.f32.gmra.mxu0 %v1538
    %v1621 = vpop.f32.mrf.mxu0
    %v1622 = vadd.f32 0.0, %v1621
    %v1623 = vpop.f32.mrf.mxu0
    %1624 = vmatprep.mubr.f32.mxu0 0.0
    %1625 = vmatmul.mubr.f32.gmra.mxu0 %v1541
    %v1626 = vpop.f32.mrf.mxu0
    %v1627 = vadd.f32 0.0, %v1626
    %v1628 = vpop.f32.mrf.mxu0
    %1629 = vmatprep.mubr.f32.mxu0 0.0
    %1630 = vmatmul.mubr.f32.gmra.mxu0 %v1544
    %v1631 = vpop.f32.mrf.mxu0
    %v1632 = vadd.f32 0.0, %v1631
    %v1633 = vpop.f32.mrf.mxu0
    %1634 = vmatprep.mubr.f32.mxu0 0.0
    %1635 = vmatmul.mubr.f32.gmra.mxu0 %v1547
    %v1636 = vpop.f32.mrf.mxu0
    %v1637 = vadd.f32 0.0, %v1636
    %v1638 = vpop.f32.mrf.mxu0
    %1639 = vdwg.mxu0
    %v1640 = vmul.f32 %v1622, 0.35355338
    %v1641 = vmul.f32 %v1627, 0.35355338
    %v1642 = vmul.f32 %v1632, 0.35355338
    %v1643 = vmul.f32 %v1637, 0.35355338
    %v1644 = vadd.f32 %v1640, %v64
    %v1645 = vadd.f32 %v1641, %v65
    %v1646 = vadd.f32 %v1642, %v64
    %v1647 = vadd.f32 %v1643, %v65
    %v1648 = vsel %vm172, %v1644, -inf
    %1649 = vmax.xlane.f32.xlu0 %v1648
    %v1650 = vpop.xlane.xlu0 %1649
    %v1651 = vsel %vm172, %v1645, -inf
    %1652 = vmax.xlane.f32.xlu0 %v1651
    %v1653 = vpop.xlane.xlu0 %1652
    %v1654 = vsel %vm172, %v1646, -inf
    %1655 = vmax.xlane.f32.xlu0 %v1654
    %v1656 = vpop.xlane.xlu0 %1655
    %v1657 = vsel %vm172, %v1647, -inf
    %1658 = vmax.xlane.f32.xlu0 %v1657
    %v1659 = vpop.xlane.xlu0 %1658
    %v1660 = vsub.f32 %v1644, %v1650
    %v1661 = vsub.f32 %v1645, %v1653
    %v1662 = vsub.f32 %v1646, %v1656
    %v1663 = vsub.f32 %v1647, %v1659
    %v1664 = vmul.f32 %v1660, 1.442695
    %v1665 = vpow.pop %v1664
    %v1666 = vmul.f32 %v1661, 1.442695
    %v1667 = vpow.pop %v1666
    %v1668 = vmul.f32 %v1662, 1.442695
    %v1669 = vpow.pop %v1668
    %v1670 = vmul.f32 %v1663, 1.442695
    %v1671 = vpow.pop %v1670
    %v1672 = vsel %vm172, %v1665, 0.0
    %1673 = vadd.xlane.f32.xlu0 %v1672
    %v1674 = vpop.xlane.xlu0 %1673
    %v1675 = vsel %vm172, %v1667, 0.0
    %1676 = vadd.xlane.f32.xlu0 %v1675
    %v1677 = vpop.xlane.xlu0 %1676
    %v1678 = vsel %vm172, %v1669, 0.0
    %1679 = vadd.xlane.f32.xlu0 %v1678
    %v1680 = vpop.xlane.xlu0 %1679
    %v1681 = vsel %vm172, %v1671, 0.0
    %1682 = vadd.xlane.f32.xlu0 %v1681
    %v1683 = vpop.xlane.xlu0 %1682
    %v1684 = vrcp.pop %v1674
    %v1685 = vrcp.pop %v1677
    %v1686 = vrcp.pop %v1680
    %v1687 = vrcp.pop %v1683
    %v1688 = vmul.f32 %v1665, %v1684
    %v1689 = vmul.f32 %v1667, %v1685
    %v1690 = vmul.f32 %v1669, %v1686
    %v1691 = vmul.f32 %v1671, %v1687
    %1692 = vrot.lane.b32.xlu0 %v1153, 72
    %v1693 = vpop.permute.xlu0 %1692
    %1694 = vrot.lane.b32.xlu0 %v1156, 72
    %v1695 = vpop.permute.xlu0 %1694
    %v1699 = vsel %vm172, %v1688, 0
    %v1702 = vsel %vm172, %v1689, 0
    %v1705 = vsel %vm172, %v1690, 0
    %v1708 = vsel %vm172, %v1691, 0
    %1710 = vmatprep.subr.mxu0 0.0
    %1711 = vmatpush1.msra.mxu0 0.0
    %1712 = vmatprep.subr.mxu0 0.0
    %1713 = vmatpush1.msra.mxu0 0.0
    %1714 = vmatprep.subr.mxu0 0.0
    %1715 = vmatpush1.msra.mxu0 0.0
    %1716 = vmatprep.subr.mxu0 0.0
    %1717 = vmatpush1.msra.mxu0 0.0
    %1718 = vmatprep.subr.mxu0 0.0
    %1719 = vmatpush1.msra.mxu0 0.0
    %1720 = vmatprep.subr.mxu0 0.0
    %1721 = vmatpush1.msra.mxu0 0.0
    %1722 = vmatprep.subr.mxu0 0.0
    %1723 = vmatpush1.msra.mxu0 0.0
    %1724 = vmatprep.subr.mxu0 0.0
    %1725 = vmatpush1.msra.mxu0 0.0
    %1726 = vmatprep.subr.mxu0 0.0
    %1727 = vmatpush1.msra.mxu0 0.0
    %1728 = vmatprep.subr.mxu0 0.0
    %1729 = vmatpush1.msra.mxu0 0.0
    %1730 = vmatprep.subr.mxu0 0.0
    %1731 = vmatpush1.msra.mxu0 0.0
    %1732 = vmatprep.subr.mxu0 0.0
    %1733 = vmatpush1.msra.mxu0 0.0
    %1734 = vmatprep.subr.mxu0 0.0
    %1735 = vmatpush1.msra.mxu0 0.0
    %1736 = vmatprep.subr.mxu0 0.0
    %1737 = vmatpush1.msra.mxu0 0.0
    %1738 = vmatprep.subr.mxu0 0.0
    %1739 = vmatpush1.msra.mxu0 %v1695
    %1740 = vmatprep.subr.mxu0 0.0
    %1741 = vmatpush1.msra.mxu0 %v1693
    %1742 = vmatprep.subr.mxu0 0.0
    %1743 = vmatpush2.msra.mxu0 0.0
    %1744 = vmatprep.subr.mxu0 0.0
    %1745 = vmatpush2.msra.mxu0 0.0
    %1746 = vmatprep.subr.mxu0 0.0
    %1747 = vmatpush2.msra.mxu0 0.0
    %1748 = vmatprep.subr.mxu0 0.0
    %1749 = vmatpush2.msra.mxu0 0.0
    %1750 = vmatprep.subr.mxu0 0.0
    %1751 = vmatpush2.msra.mxu0 0.0
    %1752 = vmatprep.subr.mxu0 0.0
    %1753 = vmatpush2.msra.mxu0 0.0
    %1754 = vmatprep.subr.mxu0 0.0
    %1755 = vmatpush2.msra.mxu0 0.0
    %1756 = vmatprep.subr.mxu0 0.0
    %1757 = vmatpush2.msra.mxu0 0.0
    %1758 = vmatprep.subr.mxu0 0.0
    %1759 = vmatpush2.msra.mxu0 0.0
    %1760 = vmatprep.subr.mxu0 0.0
    %1761 = vmatpush2.msra.mxu0 0.0
    %1762 = vmatprep.subr.mxu0 0.0
    %1763 = vmatpush2.msra.mxu0 0.0
    %1764 = vmatprep.subr.mxu0 0.0
    %1765 = vmatpush2.msra.mxu0 0.0
    %1766 = vmatprep.subr.mxu0 0.0
    %1767 = vmatpush2.msra.mxu0 0.0
    %1768 = vmatprep.subr.mxu0 0.0
    %1769 = vmatpush2.msra.mxu0 0.0
    %1770 = vmatprep.subr.mxu0 0.0
    %1771 = vmatpush2.msra.mxu0 0.0
    %1772 = vmatprep.subr.mxu0 0.0
    %1773 = vmatpush2.msra.mxu0 0.0
    %1774 = vmatprep.mubr.f32.mxu0 0.0
    %1775 = vmatmul.mubr.f32.gmra.mxu0 %v1699
    %v1776 = vpop.f32.mrf.mxu0
    %v1777 = vadd.f32 0.0, %v1776
    %v1778 = vpop.f32.mrf.mxu0
    %1779 = vmatprep.mubr.f32.mxu0 0.0
    %1780 = vmatmul.mubr.f32.gmra.mxu0 %v1702
    %v1781 = vpop.f32.mrf.mxu0
    %v1782 = vadd.f32 0.0, %v1781
    %v1783 = vpop.f32.mrf.mxu0
    %1784 = vmatprep.mubr.f32.mxu0 0.0
    %1785 = vmatmul.mubr.f32.gmra.mxu0 %v1705
    %v1786 = vpop.f32.mrf.mxu0
    %v1787 = vadd.f32 0.0, %v1786
    %v1788 = vpop.f32.mrf.mxu0
    %1789 = vmatprep.mubr.f32.mxu0 0.0
    %1790 = vmatmul.mubr.f32.gmra.mxu0 %v1708
    %v1791 = vpop.f32.mrf.mxu0
    %v1792 = vadd.f32 0.0, %v1791
    %v1793 = vpop.f32.mrf.mxu0
    %1794 = vdwg.mxu0
    %1797 = vrot.lane.b32.xlu0 %v1499, 8
    %v1798 = vpop.permute.xlu0 %1797
    %1799 = vrot.lane.b32.xlu0 %v1504, 8
    %v1800 = vpop.permute.xlu0 %1799
    %1805 = vrot.lane.b32.xlu0 %v1777, 16
    %v1806 = vpop.permute.xlu0 %1805
    %1807 = vrot.lane.b32.xlu0 %v1782, 16
    %v1808 = vpop.permute.xlu0 %1807
    %1813 = vrot.lane.b32.xlu0 %v1787, 24
    %v1814 = vpop.permute.xlu0 %1813
    %1815 = vrot.lane.b32.xlu0 %v1792, 24
    %v1816 = vpop.permute.xlu0 %1815
    %v1819 = vsel %vm201, %v1489, %v1798
    %v1820 = vsel %vm201, %v1494, %v1800
    %v1821 = vsel %vm172, %v1819, %v1806
    %v1822 = vsel %vm172, %v1820, %v1808
    %v1823 = vsel %vm837, %v1821, %v1814
    %v1824 = vsel %vm837, %v1822, %v1816
    %v1825 = vpack.c.bf16 %v1824, %v1823
    %1826 = vrot.lane.b32.xlu0 %v1111, 64
    %v1827 = vpop.permute.xlu0 %1826
    %1828 = vrot.lane.b32.xlu0 %v1112, 64
    %v1829 = vpop.permute.xlu0 %1828
    %v1833 = vsel %vm75, %v1825, 0
    %1835 = vmatprep.subr.bf16.mxu0 0
    %1836 = vmatpush1.bf16.msra.mxu0 0
    %1837 = vmatprep.subr.bf16.mxu0 0
    %1838 = vmatpush1.bf16.msra.mxu0 0
    %1839 = vmatprep.subr.bf16.mxu0 0
    %1840 = vmatpush1.bf16.msra.mxu0 0
    %1841 = vmatprep.subr.bf16.mxu0 0
    %1842 = vmatpush1.bf16.msra.mxu0 0
    %1843 = vmatprep.subr.bf16.mxu0 0
    %1844 = vmatpush1.bf16.msra.mxu0 0
    %1845 = vmatprep.subr.bf16.mxu0 0
    %1846 = vmatpush1.bf16.msra.mxu0 0
    %1847 = vmatprep.subr.bf16.mxu0 0
    %1848 = vmatpush1.bf16.msra.mxu0 %v1829
    %1849 = vmatprep.subr.bf16.mxu0 0
    %1850 = vmatpush1.bf16.msra.mxu0 %v1827
    %1851 = vmatprep.subr.bf16.mxu0 0
    %1852 = vmatpush2.bf16.msra.mxu0 0
    %1853 = vmatprep.subr.bf16.mxu0 0
    %1854 = vmatpush2.bf16.msra.mxu0 0
    %1855 = vmatprep.subr.bf16.mxu0 0
    %1856 = vmatpush2.bf16.msra.mxu0 0
    %1857 = vmatprep.subr.bf16.mxu0 0
    %1858 = vmatpush2.bf16.msra.mxu0 0
    %1859 = vmatprep.subr.bf16.mxu0 0
    %1860 = vmatpush2.bf16.msra.mxu0 0
    %1861 = vmatprep.subr.bf16.mxu0 0
    %1862 = vmatpush2.bf16.msra.mxu0 0
    %1863 = vmatprep.subr.bf16.mxu0 0
    %1864 = vmatpush2.bf16.msra.mxu0 0
    %1865 = vmatprep.subr.bf16.mxu0 0
    %1866 = vmatpush2.bf16.msra.mxu0 0
    %1867 = vmatprep.mubr.bf16.mxu0 0
    %1868 = vmatmul.mubr.bf16.gmra.mxu0 %v1833
    %v1869 = vpop.f32.mrf.mxu0
    %v1870 = vadd.f32 0.0, %v1869
    %v1871 = vpop.f32.mrf.mxu0
    %v1872 = vpop.f32.mrf.mxu0
    %v1873 = vadd.f32 0.0, %v1872
    %v1874 = vpop.f32.mrf.mxu0
    %1875 = vdwg.mxu0
    %v1876 = vadd.f32 %v1069, %v1870
    %v1877 = vadd.f32 %v1070, %v1873
    %v1878 = vmul.f32 %v1876, %v1876
    %v1879 = vmul.f32 %v1877, %v1877
    %v1880 = vsel %vm75, %v1878, 0.0
    %1881 = vadd.xlane.f32.xlu0 %v1880
    %v1882 = vpop.xlane.xlu0 %1881
    %v1883 = vsel %vm75, %v1879, 0.0
    %1884 = vadd.xlane.f32.xlu0 %v1883
    %v1885 = vpop.xlane.xlu0 %1884
    %v1886 = vmul.f32 %v1882, %v82
    %v1887 = vmul.f32 %v1885, %v82
    %v1888 = vadd.f32 %v1886, 1.1920929e-07
    %v1889 = vadd.f32 %v1887, 1.1920929e-07
    %v1890 = vrsqrt.pop %v1888
    %v1891 = vrsqrt.pop %v1889
    %v1892 = vmul.f32 %v1876, %v1890
    %v1893 = vmul.f32 %v1877, %v1891
    %1894 = vrot.lane.b32.xlu0 %v1098, 96
    %v1895 = vpop.permute.xlu0 %1894
    %v1897 = vmul.f32 %v1892, %v1895
    %v1898 = vmul.f32 %v1893, %v1895
    %v1899 = vpack.c.bf16 %v1898, %v1897
    %v1900 = vunpack.c.l.b16 %v1072
    %v1901 = vunpack.c.l.b16 %v1073
    %v1902 = vunpack.c.l.b16 %v1074
    %v1903 = vunpack.c.l.b16 %v1075
    %v1904 = vpack.c.b16 %v1901, %v1900
    %v1905 = vpack.c.b16 %v1903, %v1902
    %v1909 = vsel %vm75, %v1899, 0
    %1911 = vmatprep.subr.bf16.mxu0 0
    %1912 = vmatpush1.bf16.msra.mxu0 0
    %1913 = vmatprep.subr.bf16.mxu0 0
    %1914 = vmatpush1.bf16.msra.mxu0 0
    %1915 = vmatprep.subr.bf16.mxu0 0
    %1916 = vmatpush1.bf16.msra.mxu0 0
    %1917 = vmatprep.subr.bf16.mxu0 0
    %1918 = vmatpush1.bf16.msra.mxu0 0
    %1919 = vmatprep.subr.bf16.mxu0 0
    %1920 = vmatpush1.bf16.msra.mxu0 0
    %1921 = vmatprep.subr.bf16.mxu0 0
    %1922 = vmatpush1.bf16.msra.mxu0 0
    %1923 = vmatprep.subr.bf16.mxu0 0
    %1924 = vmatpush1.bf16.msra.mxu0 %v1905
    %1925 = vmatprep.subr.bf16.mxu0 0
    %1926 = vmatpush1.bf16.msra.mxu0 %v1904
    %1927 = vmatprep.subr.bf16.mxu0 0
    %1928 = vmatpush2.bf16.msra.mxu0 0
    %1929 = vmatprep.subr.bf16.mxu0 0
    %1930 = vmatpush2.bf16.msra.mxu0 0
    %1931 = vmatprep.subr.bf16.mxu0 0
    %1932 = vmatpush2.bf16.msra.mxu0 0
    %1933 = vmatprep.subr.bf16.mxu0 0
    %1934 = vmatpush2.bf16.msra.mxu0 0
    %1935 = vmatprep.subr.bf16.mxu0 0
    %1936 = vmatpush2.bf16.msra.mxu0 0
    %1937 = vmatprep.subr.bf16.mxu0 0
    %1938 = vmatpush2.bf16.msra.mxu0 0
    %1939 = vmatprep.subr.bf16.mxu0 0
    %1940 = vmatpush2.bf16.msra.mxu0 0
    %1941 = vmatprep.subr.bf16.mxu0 0
    %1942 = vmatpush2.bf16.msra.mxu0 0
    %1943 = vmatprep.mubr.bf16.mxu0 0
    %1944 = vmatmul.mubr.bf16.gmra.mxu0 %v1909
    %v1945 = vpop.f32.mrf.mxu0
    %v1946 = vadd.f32 0.0, %v1945
    %v1947 = vpop.f32.mrf.mxu0
    %v1948 = vpop.f32.mrf.mxu0
    %v1949 = vadd.f32 0.0, %v1948
    %v1950 = vpop.f32.mrf.mxu0
    %1951 = vdwg.mxu0
    %v1952 = vsub.f32 0.0, %v1946
    %v1953 = vsub.f32 0.0, %v1949
    %v1954 = vmul.f32 %v1952, 1.442695
    %v1955 = vpow.pop %v1954
    %v1956 = vmul.f32 %v1953, 1.442695
    %v1957 = vpow.pop %v1956
    %v1958 = vadd.f32 %v1955, 1.0
    %v1959 = vadd.f32 %v1957, 1.0
    %v1960 = vrcp.pop %v1958
    %v1961 = vmul.f32 1.0, %v1960
    %v1962 = vrcp.pop %v1959
    %v1963 = vmul.f32 1.0, %v1962
    %v1964 = vmul.f32 %v1946, %v1961
    %v1965 = vmul.f32 %v1949, %v1963
    %1968 = vrot.lane.b32.xlu0 %v1946, 64
    %v1969 = vpop.permute.xlu0 %1968
    %1970 = vrot.lane.b32.xlu0 %v1949, 64
    %v1971 = vpop.permute.xlu0 %1970
    %v1974 = vmul.f32 %v1964, %v1969
    %v1975 = vmul.f32 %v1965, %v1971
    %v1976 = vpack.c.bf16 %v1975, %v1974
    %s1977 = scalar_lea.vmem %s4, 32
    %v1978 = vld [vmem:[%s1977] sm:$0xf]
    %v1979 = vld [vmem:[%s1977 + $0x4] sm:$0xf]
    %v1980 = vld [vmem:[%s1977 + $0x8] sm:$0xf]
    %v1981 = vld [vmem:[%s1977 + $0xc] sm:$0xf]
    %v1982 = vld [vmem:[%s1977 + $0x10] sm:$0xf]
    %v1983 = vld [vmem:[%s1977 + $0x14] sm:$0xf]
    %v1984 = vld [vmem:[%s1977 + $0x18] sm:$0xf]
    %v1985 = vld [vmem:[%s1977 + $0x1c] sm:$0xf]
    %v1994 = vunpack.c.l.b16 %v1978
    %v1995 = vunpack.c.l.b16 %v1979
    %v1996 = vunpack.c.l.b16 %v1980
    %v1997 = vunpack.c.l.b16 %v1981
    %v1998 = vunpack.c.l.b16 %v1982
    %v1999 = vunpack.c.l.b16 %v1983
    %v2000 = vunpack.c.l.b16 %v1984
    %v2001 = vunpack.c.l.b16 %v1985
    %v2002 = vpack.c.b16 %v1995, %v1994
    %v2003 = vpack.c.b16 %v1997, %v1996
    %v2004 = vpack.c.b16 %v1999, %v1998
    %v2005 = vpack.c.b16 %v2001, %v2000
    %v2011 = vsel %vm1024, %v1976, 0
    %2013 = vmatprep.subr.bf16.mxu0 0
    %2014 = vmatpush1.bf16.msra.mxu0 0
    %2015 = vmatprep.subr.bf16.mxu0 0
    %2016 = vmatpush1.bf16.msra.mxu0 0
    %2017 = vmatprep.subr.bf16.mxu0 0
    %2018 = vmatpush1.bf16.msra.mxu0 0
    %2019 = vmatprep.subr.bf16.mxu0 0
    %2020 = vmatpush1.bf16.msra.mxu0 0
    %2021 = vmatprep.subr.bf16.mxu0 0
    %2022 = vmatpush1.bf16.msra.mxu0 %v2005
    %2023 = vmatprep.subr.bf16.mxu0 0
    %2024 = vmatpush1.bf16.msra.mxu0 %v2004
    %2025 = vmatprep.subr.bf16.mxu0 0
    %2026 = vmatpush1.bf16.msra.mxu0 %v2003
    %2027 = vmatprep.subr.bf16.mxu0 0
    %2028 = vmatpush1.bf16.msra.mxu0 %v2002
    %2029 = vmatprep.subr.bf16.mxu0 0
    %2030 = vmatpush2.bf16.msra.mxu0 0
    %2031 = vmatprep.subr.bf16.mxu0 0
    %2032 = vmatpush2.bf16.msra.mxu0 0
    %2033 = vmatprep.subr.bf16.mxu0 0
    %2034 = vmatpush2.bf16.msra.mxu0 0
    %2035 = vmatprep.subr.bf16.mxu0 0
    %2036 = vmatpush2.bf16.msra.mxu0 0
    %2037 = vmatprep.subr.bf16.mxu0 0
    %2038 = vmatpush2.bf16.msra.mxu0 0
    %2039 = vmatprep.subr.bf16.mxu0 0
    %2040 = vmatpush2.bf16.msra.mxu0 0
    %2041 = vmatprep.subr.bf16.mxu0 0
    %2042 = vmatpush2.bf16.msra.mxu0 0
    %2043 = vmatprep.subr.bf16.mxu0 0
    %2044 = vmatpush2.bf16.msra.mxu0 0
    %2045 = vmatprep.mubr.bf16.mxu0 0
    %2046 = vmatmul.mubr.bf16.gmra.mxu0 %v2011
    %v2047 = vpop.f32.mrf.mxu0
    %v2048 = vadd.f32 0.0, %v2047
    %v2049 = vpop.f32.mrf.mxu0
    %v2050 = vpop.f32.mrf.mxu0
    %v2051 = vadd.f32 0.0, %v2050
    %v2052 = vpop.f32.mrf.mxu0
    %2053 = vdwg.mxu0
    %v2054 = vadd.f32 %v1876, %v2048
    %v2055 = vadd.f32 %v1877, %v2051
    %v2056 = vld [vmem:[%s6] sm:$0x1]
    %v2057 = vmul.f32 %v2054, %v2054
    %v2058 = vmul.f32 %v2055, %v2055
    %v2059 = vsel %vm75, %v2057, 0.0
    %2060 = vadd.xlane.f32.xlu0 %v2059
    %v2061 = vpop.xlane.xlu0 %2060
    %v2062 = vsel %vm75, %v2058, 0.0
    %2063 = vadd.xlane.f32.xlu0 %v2062
    %v2064 = vpop.xlane.xlu0 %2063
    %v2065 = vmul.f32 %v2061, %v82
    %v2066 = vmul.f32 %v2064, %v82
    %v2067 = vadd.f32 %v2065, 1.1920929e-07
    %v2068 = vadd.f32 %v2066, 1.1920929e-07
    %v2069 = vrsqrt.pop %v2067
    %v2070 = vrsqrt.pop %v2068
    %v2071 = vmul.f32 %v2054, %v2069
    %v2072 = vmul.f32 %v2055, %v2070
    %v2074 = vlaneseq
    %v2075 = vshrl.u32 %v2074, 7
    %v2076 = vsub.s32 0, %v2075
    %v2077 = vrot.slane %v2056, %v2076
    %v2079 = vmul.f32 %v2071, %v2077
    %v2080 = vmul.f32 %v2072, %v2077
    %v2081 = vpack.c.bf16 %v2080, %v2079
    %v2082 = vld [vmem:[#allocation5] sm:$0xf]
    %v2083 = vld [vmem:[#allocation5 + $0x4] sm:$0xf]
    %v2084 = vld [vmem:[#allocation5 + $0x8] sm:$0xf]
    %v2085 = vld [vmem:[#allocation5 + $0xc] sm:$0xf]
    %v2086 = vld [vmem:[%s8] sm:$0x1]
    %v2088 = vlaneseq
    %v2089 = vshrl.u32 %v2088, 7
    %v2090 = vsub.s32 0, %v2089
    %v2091 = vrot.slane %v2086, %v2090
    %v2097 = vunpack.c.l.b16 %v2082
    %v2098 = vunpack.c.l.b16 %v2083
    %v2099 = vunpack.c.l.b16 %v2084
    %v2100 = vunpack.c.l.b16 %v2085
    %v2101 = vpack.c.b16 %v2098, %v2097
    %v2102 = vpack.c.b16 %v2100, %v2099
    %v2106 = vsel %vm75, %v2081, 0
    %2108 = vmatprep.subr.bf16.mxu0 0
    %2109 = vmatpush1.bf16.msra.mxu0 0
    %2110 = vmatprep.subr.bf16.mxu0 0
    %2111 = vmatpush1.bf16.msra.mxu0 0
    %2112 = vmatprep.subr.bf16.mxu0 0
    %2113 = vmatpush1.bf16.msra.mxu0 0
    %2114 = vmatprep.subr.bf16.mxu0 0
    %2115 = vmatpush1.bf16.msra.mxu0 0
    %2116 = vmatprep.subr.bf16.mxu0 0
    %2117 = vmatpush1.bf16.msra.mxu0 0
    %2118 = vmatprep.subr.bf16.mxu0 0
    %2119 = vmatpush1.bf16.msra.mxu0 0
    %2120 = vmatprep.subr.bf16.mxu0 0
    %2121 = vmatpush1.bf16.msra.mxu0 %v2102
    %2122 = vmatprep.subr.bf16.mxu0 0
    %2123 = vmatpush1.bf16.msra.mxu0 %v2101
    %2124 = vmatprep.subr.bf16.mxu0 0
    %2125 = vmatpush2.bf16.msra.mxu0 0
    %2126 = vmatprep.subr.bf16.mxu0 0
    %2127 = vmatpush2.bf16.msra.mxu0 0
    %2128 = vmatprep.subr.bf16.mxu0 0
    %2129 = vmatpush2.bf16.msra.mxu0 0
    %2130 = vmatprep.subr.bf16.mxu0 0
    %2131 = vmatpush2.bf16.msra.mxu0 0
    %2132 = vmatprep.subr.bf16.mxu0 0
    %2133 = vmatpush2.bf16.msra.mxu0 0
    %2134 = vmatprep.subr.bf16.mxu0 0
    %2135 = vmatpush2.bf16.msra.mxu0 0
    %2136 = vmatprep.subr.bf16.mxu0 0
    %2137 = vmatpush2.bf16.msra.mxu0 0
    %2138 = vmatprep.subr.bf16.mxu0 0
    %2139 = vmatpush2.bf16.msra.mxu0 0
    %2140 = vmatprep.mubr.bf16.mxu0 0
    %2141 = vmatmul.mubr.bf16.gmra.mxu0 %v2106
    %v2142 = vpop.f32.mrf.mxu0
    %v2143 = vadd.f32 %v2091, %v2142
    %v2144 = vpop.f32.mrf.mxu0
    %v2145 = vpop.f32.mrf.mxu0
    %v2146 = vadd.f32 %v2091, %v2145
    %v2147 = vpop.f32.mrf.mxu0
    %2148 = vdwg.mxu0
    %2149 = vst [vmem:[#allocation7] sm:$0xff] %v2143
    %2150 = vst [vmem:[#allocation7 + $0x8] sm:$0xff] %v2146
    // Predicated region
    $region46: #{tpu_custom_call.1} parent=1 // pred_check
      _
    $region47: #{tpu_custom_call.1} parent=1 // pred_check_branch
      %2152 = sbr.rel (0) target = $region49
    $region48: #{tpu_custom_call.1} parent=1 // pred_region
      %s2154 = ssub.s32 256, 256
      %2155 = vsyncadd [#allocation4], %s2154
      %s2156 = sshll.u32 [#allocation7], 4
      %s2157 = int_to_ptr.vmem [resolvable:$true] %s2156
      %2162 = dma.vmem_to_hbm [thread:$0]  %s2157, 256, %s9, [#allocation4], 128, 128, 8
    $region49: #{tpu_custom_call.1} parent=1 // pred_fallthru
      _
    // Predicated region
    $region50: #{tpu_custom_call.1} parent=1 // pred_check
      _
    $region51: #{tpu_custom_call.1} parent=1 // pred_check_branch
      %2164 = sbr.rel (0) target = $region53
    $region52: #{tpu_custom_call.1} parent=1 // pred_region
      %2165 = dma.done [#allocation4], 256
    $region53: #{tpu_custom_call.1} parent=1 // pred_fallthru
      _
    %2166 = vsyncpa [#allocation3], 1
    %2167 = vsyncpa [#allocation6], 1
    %2168 = vsyncpa [#allocation4], 1

</llo_original>
